<compile_context>
chip_gen: v5e
topology: v5e:2x2
jax: 0.10.0
libtpu: 0.0.40
codegen_flags: <defaults>
</compile_context>

<pallas_src>
import jax
import jax.numpy as jnp
from jax.experimental import pallas as pl
from jax.experimental.pallas import tpu as pltpu


def _round_up(x: int, m: int) -> int:
    return ((x + m - 1) // m) * m


def _choose_tiling(B: int, tile_b_max: int):
    """Pick (B_pad, TB): TB a multiple of 1024 that divides B_pad, minimal padding."""
    tile_b_max = max(1024, (min(tile_b_max, 32 * 1024) // 1024) * 1024)
    B_al = _round_up(B, 1024)
    m = B_al // 1024
    k = min(m, tile_b_max // 1024)
    while m % k:
        k -= 1
    TB = 1024 * k
    # If the divisor-constrained tile is much smaller than what fits, prefer a big
    # tile and pad the tail — but only when the padded fraction stays small.
    TB_big = min(tile_b_max, B_al)
    if TB * 8 <= TB_big and (_round_up(B, TB_big) - B) * 8 <= B_al:
        TB = TB_big
        B_al = _round_up(B, TB_big)
    return B_al, TB


def _rnf_kernel(x_ref, w1_ref, b1_ref, w2_ref, b2_ref, o_ref):
    # x_ref : (TB, D)         f32  -- one streamed batch tile
    # w1_ref: (D, H)          f32  -- VMEM-resident across grid steps
    # b1_ref: (1, H)          f32
    # w2_ref: (1, H)          f32  -- second-layer weights as a row
    # b2_ref: (1, 1)          f32  -- SMEM scalar
    # o_ref : (TB//128, 128)  f32  -- lane-dense logits: tile row r -> (r//128, r%128)
    TB = x_ref.shape[0]
    H = w1_ref.shape[1]
    CHUNK = min(TB, 1024)          # compute chunk (rows); multiple of 128
    n_chunks = TB // CHUNK
    rows_out = CHUNK // 128        # output sublane rows produced per chunk (8)

    w1 = w1_ref[...]
    b1 = b1_ref[...]
    w2 = w2_ref[...]
    b2 = b2_ref[0, 0]

    def body(c, carry):
        r0 = pl.multiple_of(c * CHUNK, 128)
        xc = x_ref[pl.ds(r0, CHUNK), :]                              # (CHUNK, D) f32
        # Layer 1 on the MXU with f32 accumulation; bias + ReLU on the VPU.
        h = jnp.dot(xc, w1, preferred_element_type=jnp.float32)
        h = jnp.maximum(h + b1, 0.0)                                 # (CHUNK, H)
        # Layer 2 (H -> 1): VPU multiply + cross-lane reduce, grouped so 128
        # consecutive batch rows land in the 128 lanes of one output row.
        hw = (h * w2).reshape(rows_out, 128, H)                      # (8, 128, H)
        logits = jnp.sum(hw, axis=-1) + b2                           # (8, 128) f32
        q0 = pl.multiple_of(c * rows_out, 8)
        o_ref[pl.ds(q0, rows_out), :] = logits.astype(o_ref.dtype)
        return carry

    jax.lax.fori_loop(0, n_chunks, body, 0, unroll=True)


def rnf_detector_forward(feats, w1, b1, w2, b2, *, tile_b=16384):
    """Fused forward pass of RNFDetector.

    feats: (B, D) float32
    w1: (D, H), b1: (H,), w2: (H, 1), b2: (1,)   (weights stored as (in, out))
    returns: (B,) float32 logits (matches .squeeze(-1) in the PyTorch module)
    """
    B, D = feats.shape
    H = w1.shape[1]

    B_pad, TB = _choose_tiling(B, tile_b)
    G = B_pad // TB          # on v7x keep G >= 2 so "parallel" can use both TCs

    x = feats
    if B_pad != B:
        # Tail / tiny-batch fallback only; the common path (B % TB == 0) copies nothing.
        x = jnp.pad(x, ((0, B_pad - B), (0, 0)))

    w1f = w1.astype(jnp.float32)
    b1_row = b1.reshape(1, H).astype(jnp.float32)
    w2_row = w2.reshape(1, H).astype(jnp.float32)
    b2_sc = b2.reshape(1, 1).astype(jnp.float32)

    # VMEM budget: 2 feats buffers (lane-padded to 128), 2 output buffers, weights,
    # plus a few MiB of chunk intermediates.  Capped v7x-safe (64 MiB physical).
    lanes_x = _round_up(D, 128)
    vmem_need = 2 * TB * lanes_x * 4 + 2 * TB * 4 + (6 << 20)
    vmem_limit = int(min(max(vmem_need, 32 << 20), 56 << 20))

    cost = pl.CostEstimate(
        flops=2 * B_pad * D * H + 3 * B_pad * H,
        transcendentals=0,
        bytes_accessed=B_pad * D * 4 + D * H * 4 + 2 * H * 4 + 4 + B_pad * 4,
    )

    out = pl.pallas_call(
        _rnf_kernel,
        out_shape=jax.ShapeDtypeStruct((B_pad // 128, 128), jnp.float32),
        grid_spec=pltpu.PrefetchScalarGridSpec(
            num_scalar_prefetch=0,
            grid=(G,),
            in_specs=[
                # Streamed feats tile (default double-buffered pipeline).
                pl.BlockSpec((TB, D), lambda i: (i, 0)),
                # Weights / biases: constant block index -> VMEM-resident.
                pl.BlockSpec((D, H), lambda i: (0, 0)),
                pl.BlockSpec((1, H), lambda i: (0, 0)),
                pl.BlockSpec((1, H), lambda i: (0, 0)),
                # Scalar output bias lives in SMEM.
                pl.BlockSpec(memory_space=pltpu.MemorySpace.SMEM),
            ],
            out_specs=pl.BlockSpec((TB // 128, 128), lambda i: (i, 0)),
        ),
        compiler_params=pltpu.CompilerParams(
            dimension_semantics=("parallel",),
            vmem_limit_bytes=vmem_limit,
        ),
        cost_estimate=cost,
    )(x, w1f, b1_row, w2_row, b2_sc)

    res = out.reshape(-1)            # (B_pad//128, 128) row-major == logits[0:B_pad]
    if B_pad != B:
        res = res[:B]
    return res


def _reference(feats, w1, b1, w2, b2):
    """True fp32 reference (HIGHEST matmul precision)."""
    h = jnp.maximum(
        jnp.dot(feats, w1, precision=jax.lax.Precision.HIGHEST) + b1, 0.0)
    return jnp.dot(h, w2, precision=jax.lax.Precision.HIGHEST)[:, 0] + b2[0]


def init_params(key, input_dim, hidden=128):
    """Deterministic synthetic parameters matching nn.Linear shapes (stored (in, out))."""
    k1, k2, k3, k4 = jax.random.split(key, 4)
    w1 = jax.random.normal(k1, (input_dim, hidden), jnp.float32) * 0.05
    b1 = jax.random.normal(k2, (hidden,), jnp.float32) * 0.05
    w2 = jax.random.normal(k3, (hidden, 1), jnp.float32) * 0.05
    b2 = jax.random.normal(k4, (1,), jnp.float32) * 0.05
    return w1, b1, w2, b2


if __name__ == "__main__":
    key = jax.random.PRNGKey(0)
    k_in, k_par, k_in2, k_in3 = jax.random.split(key, 4)

    INPUT_DIM, HIDDEN = 32, 128
    w1, b1, w2, b2 = init_params(k_par, INPUT_DIM, HIDDEN)

    # Tolerances: the in-kernel MXU matmul uses the default (bf16-pass) f32
    # precision, compared against an explicit fp32 HIGHEST reference.
    ATOL = RTOL = 1e-2

    # 1) Small batch (pads to a single 1024-row tile).
    B = 8
    feats = jax.random.normal(k_in, (B, INPUT_DIM), jnp.float32)
    logits = jax.block_until_ready(rnf_detector_forward(feats, w1, b1, w2, b2))
    ref = _reference(feats, w1, b1, w2, b2)
    assert logits.shape == (B,)
    assert jnp.allclose(logits, ref, atol=ATOL, rtol=RTOL)

    # 2) Multi-tile, copy-free path (B % TB == 0, grid of 2 steps).
    B2 = 2048
    feats2 = jax.random.normal(k_in2, (B2, INPUT_DIM), jnp.float32)
    logits2 = jax.block_until_ready(
        rnf_detector_forward(feats2, w1, b1, w2, b2, tile_b=1024))
    ref2 = _reference(feats2, w1, b1, w2, b2)
    assert logits2.shape == (B2,)
    assert jnp.allclose(logits2, ref2, atol=ATOL, rtol=RTOL)

    # 3) Ragged batch exercising the tail-padding fallback path.
    B3 = 150
    feats3 = jax.random.normal(k_in3, (B3, INPUT_DIM), jnp.float32)
    logits3 = jax.block_until_ready(rnf_detector_forward(feats3, w1, b1, w2, b2))
    ref3 = _reference(feats3, w1, b1, w2, b2)
    assert logits3.shape == (B3,)
    assert jnp.allclose(logits3, ref3, atol=ATOL, rtol=RTOL)

    print("KERNEL_OK")
</pallas_src>

<mosaic_0001>
module attributes {stable_mosaic.version = 11 : i64} {
  func.func @_rnf_kernel(%arg0: i32, %arg1: memref<1024x32xf32, #tpu.memory_space<vmem>>, %arg2: memref<32x128xf32, #tpu.memory_space<vmem>>, %arg3: memref<1x128xf32, #tpu.memory_space<vmem>>, %arg4: memref<1x128xf32, #tpu.memory_space<vmem>>, %arg5: memref<1x1xf32, #tpu.memory_space<smem>>, %arg6: memref<8x128xf32, #tpu.memory_space<vmem>>) attributes {dimension_semantics = [#tpu.dimension_semantics<parallel>], iteration_bounds = array<i64: 1>, scalar_prefetch = 0 : i64, scratch_operands = 0 : i64, tpu.core_type = #tpu.core_type<tc>, window_params = [{transform_indices = @transform_0, window_bounds = array<i64: 1024, 32>}, {pipeline_mode = #tpu.pipeline_mode<synchronous>, transform_indices = @transform_1, window_bounds = array<i64: 32, 128>}, {pipeline_mode = #tpu.pipeline_mode<synchronous>, transform_indices = @transform_2, window_bounds = array<i64: 1, 128>}, {pipeline_mode = #tpu.pipeline_mode<synchronous>, transform_indices = @transform_3, window_bounds = array<i64: 1, 128>}, {transform_indices = @transform_4, window_bounds = array<i64: 1, 1>}, {transform_indices = @transform_5, window_bounds = array<i64: 8, 128>}]} {
    %c0 = arith.constant 0 : index
    %c0_0 = arith.constant 0 : index
    %0 = vector.load %arg2[%c0, %c0_0] : memref<32x128xf32, #tpu.memory_space<vmem>>, vector<32x128xf32>
    %c0_1 = arith.constant 0 : index
    %c0_2 = arith.constant 0 : index
    %1 = vector.load %arg3[%c0_1, %c0_2] : memref<1x128xf32, #tpu.memory_space<vmem>>, vector<1x128xf32>
    %c0_3 = arith.constant 0 : index
    %c0_4 = arith.constant 0 : index
    %2 = vector.load %arg4[%c0_3, %c0_4] : memref<1x128xf32, #tpu.memory_space<vmem>>, vector<1x128xf32>
    %c0_5 = arith.constant 0 : index
    %c0_6 = arith.constant 0 : index
    %3 = memref.load %arg5[%c0_5, %c0_6] : memref<1x1xf32, #tpu.memory_space<smem>>
    %c0_i32 = arith.constant 0 : i32
    %c1024_i32 = arith.constant 1024 : i32
    %4 = arith.muli %c0_i32, %c1024_i32 : i32
    %5 = tpu.assume_multiple %4, 128 : i32
    %6 = arith.index_cast %5 : i32 to index
    %c0_7 = arith.constant 0 : index
    %7 = vector.load %arg1[%6, %c0_7] : memref<1024x32xf32, #tpu.memory_space<vmem>>, vector<1024x32xf32>
    %cst = arith.constant dense<0.000000e+00> : vector<1024x128xf32>
    %8 = tpu.matmul %7, %0, %cst {dimension_numbers = #tpu.dot_dimension_numbers<[1], [0], [0], [1], [0, 0, 1, 1], [], []>} : vector<1024x32xf32>, vector<32x128xf32>, vector<1024x128xf32> -> vector<1024x128xf32>
    %9 = vector.broadcast %1 : vector<1x128xf32> to vector<1024x128xf32>
    %10 = arith.addf %8, %9 : vector<1024x128xf32>
    %cst_8 = arith.constant 0.000000e+00 : f32
    %11 = vector.broadcast %cst_8 : f32 to vector<1024x128xf32>
    %12 = arith.maximumf %10, %11 : vector<1024x128xf32>
    %13 = vector.broadcast %2 : vector<1x128xf32> to vector<1024x128xf32>
    %14 = arith.mulf %12, %13 : vector<1024x128xf32>
    %15 = vector.shape_cast %14 : vector<1024x128xf32> to vector<8x128x128xf32>
    %cst_9 = arith.constant dense<0.000000e+00> : vector<8x128xf32>
    %16 = vector.multi_reduction <add>, %15, %cst_9 [2] : vector<8x128x128xf32> to vector<8x128xf32>
    %17 = vector.broadcast %3 : f32 to vector<8x128xf32>
    %18 = arith.addf %16, %17 : vector<8x128xf32>
    %c8_i32 = arith.constant 8 : i32
    %19 = arith.muli %c0_i32, %c8_i32 : i32
    %20 = tpu.assume_multiple %19, 8 : i32
    %21 = arith.index_cast %20 : i32 to index
    %c0_10 = arith.constant 0 : index
    %22 = vector.load %arg6[%21, %c0_10] : memref<8x128xf32, #tpu.memory_space<vmem>>, vector<8x128xf32>
    tpu.vector_store %arg6[%21, %c0_10], %18 {strides = array<i32>} : memref<8x128xf32, #tpu.memory_space<vmem>>, vector<8x128xf32>,
    %c1_i32 = arith.constant 1 : i32
    return
  }
  func.func @transform_0(%arg0: i32) -> (i32, i32) {
    %c0_i32 = arith.constant 0 : i32
    %c0_i32_0 = arith.constant 0 : i32
    return %arg0, %c0_i32 : i32, i32
  }
  func.func @transform_1(%arg0: i32) -> (i32, i32) {
    %c0_i32 = arith.constant 0 : i32
    %c0_i32_0 = arith.constant 0 : i32
    %c0_i32_1 = arith.constant 0 : i32
    return %c0_i32, %c0_i32_0 : i32, i32
  }
  func.func @transform_2(%arg0: i32) -> (i32, i32) {
    %c0_i32 = arith.constant 0 : i32
    %c0_i32_0 = arith.constant 0 : i32
    %c0_i32_1 = arith.constant 0 : i32
    return %c0_i32, %c0_i32_0 : i32, i32
  }
  func.func @transform_3(%arg0: i32) -> (i32, i32) {
    %c0_i32 = arith.constant 0 : i32
    %c0_i32_0 = arith.constant 0 : i32
    %c0_i32_1 = arith.constant 0 : i32
    return %c0_i32, %c0_i32_0 : i32, i32
  }
  func.func @transform_4(%arg0: i32) -> (i32, i32) {
    %c0_i32 = arith.constant 0 : i32
    %c0_i32_0 = arith.constant 0 : i32
    %c0_i32_1 = arith.constant 0 : i32
    return %c0_i32, %c0_i32_0 : i32, i32
  }
  func.func @transform_5(%arg0: i32) -> (i32, i32) {
    %c0_i32 = arith.constant 0 : i32
    %c0_i32_0 = arith.constant 0 : i32
    return %arg0, %c0_i32 : i32, i32
  }
}

</mosaic_0001>

<llo_original>
// kernel: tpu_custom_call.1
$region0: #{tpu_custom_call.1}
  #allocation0 [shape = 'u32[]', space=smem, size = 0x4, offset = 0x4, fixed_abs, tag = 'smem constant byte address 0x4 - core index']
  #allocation1 [shape = 'u32[72,128]{1,0:T(1,128)}', space=vmem, size = 0x9000, scoped, tag = 'internal scratch']
  #allocation2 [shape = 'f32[1,1]{1,0:T(1,128)S(6)}', space=smem, size = 0x200, scoped, tag = 'scoped memory for tpu_custom_call.1']
  %s0 = inlined_call_operand.vmem [shape: f32[1024,32], index: 0, kind: input, shape index: {}]
  %s1 = inlined_call_operand.vmem [shape: f32[32,128], index: 1, kind: input, shape index: {}]
  %s2 = inlined_call_operand.vmem [shape: f32[1,128], index: 2, kind: input, shape index: {}]
  %s3 = inlined_call_operand.vmem [shape: f32[1,128], index: 3, kind: input, shape index: {}]
  %s4 = inlined_call_operand.<no memory space> [shape: f32[1,1], index: 4, kind: input, shape index: {}]
  %s5 = inlined_call_operand.hbm [shape: f32[8,128], index: 5, kind: output, shape index: {}]
  %s6 = sld [smem:[#allocation0]]
  $region30: #{tpu_custom_call.1} parent=0
    _
  %s8 = ssub.s32 1, %s6
  %s9 = scalar_select 0, %s8, %s6
  %10 = sst [smem:[#allocation2]] %s4
  $region1: #{tpu_custom_call.1} parent=0
    #allocation3 [shape = 'u8[4096]{0}', space=vmem, size = 0x1000, scoped, tag = 'output window, operand 0, single buffered']
    #allocation4 [shape = 's32[1]{0}', space=sflag, size = 0x4, scoped, tag = 'scoped memory for tpu_custom_call.1']
    %11 = vsyncpa [#allocation4], 0
    // Predicated region
    $region2: #{tpu_custom_call.1} parent=1 // pred_check
      _
    $region3: #{tpu_custom_call.1} parent=1 // pred_check_branch
      %13 = sbr.rel (0) target = $region5
    $region4: #{tpu_custom_call.1} parent=1 // pred_region
      _
    $region5: #{tpu_custom_call.1} parent=1 // pred_fallthru
      _
    // Predicated region
    $region6: #{tpu_custom_call.1} parent=1 // pred_check
      _
    $region7: #{tpu_custom_call.1} parent=1 // pred_check_branch
      %15 = sbr.rel (0) target = $region9
    $region8: #{tpu_custom_call.1} parent=1 // pred_region
      _
    $region9: #{tpu_custom_call.1} parent=1 // pred_fallthru
      _
    // Predicated region
    $region10: #{tpu_custom_call.1} parent=1 // pred_check
      _
    $region11: #{tpu_custom_call.1} parent=1 // pred_check_branch
      %17 = sbr.rel (0) target = $region13
    $region12: #{tpu_custom_call.1} parent=1 // pred_region
      _
    $region13: #{tpu_custom_call.1} parent=1 // pred_fallthru
      _
    // Predicated region
    $region14: #{tpu_custom_call.1} parent=1 // pred_check
      _
    $region15: #{tpu_custom_call.1} parent=1 // pred_check_branch
      %19 = sbr.rel (0) target = $region17
    $region16: #{tpu_custom_call.1} parent=1 // pred_region
      _
    $region17: #{tpu_custom_call.1} parent=1 // pred_fallthru
      _
    // Predicated region
    $region18: #{tpu_custom_call.1} parent=1 // pred_check
      _
    $region19: #{tpu_custom_call.1} parent=1 // pred_check_branch
      %21 = sbr.rel (0) target = $region21
    $region20: #{tpu_custom_call.1} parent=1 // pred_region
      _
    $region21: #{tpu_custom_call.1} parent=1 // pred_fallthru
      _
    %v22 = vld [vmem:[%s1] sm:$0xff]
    %v23 = vld [vmem:[%s1 + $0x8] sm:$0xff]
    %v24 = vld [vmem:[%s1 + $0x10] sm:$0xff]
    %v25 = vld [vmem:[%s1 + $0x18] sm:$0xff]
    %v26 = vld [vmem:[%s2] sm:$0x1]
    %v27 = vld [vmem:[%s3] sm:$0x1]
    %s28 = sld [smem:[#allocation2]]
    %v29 = vld [vmem:[%s0] sm:$0xff]
    %v30 = vld [vmem:[%s0 + $0x8] sm:$0xff]
    %v31 = vld [vmem:[%s0 + $0x10] sm:$0xff]
    %v32 = vld [vmem:[%s0 + $0x18] sm:$0xff]
    %v33 = vld [vmem:[%s0 + $0x20] sm:$0xff]
    %v34 = vld [vmem:[%s0 + $0x28] sm:$0xff]
    %v35 = vld [vmem:[%s0 + $0x30] sm:$0xff]
    %v36 = vld [vmem:[%s0 + $0x38] sm:$0xff]
    %v37 = vld [vmem:[%s0 + $0x40] sm:$0xff]
    %v38 = vld [vmem:[%s0 + $0x48] sm:$0xff]
    %v39 = vld [vmem:[%s0 + $0x50] sm:$0xff]
    %v40 = vld [vmem:[%s0 + $0x58] sm:$0xff]
    %v41 = vld [vmem:[%s0 + $0x60] sm:$0xff]
    %v42 = vld [vmem:[%s0 + $0x68] sm:$0xff]
    %v43 = vld [vmem:[%s0 + $0x70] sm:$0xff]
    %v44 = vld [vmem:[%s0 + $0x78] sm:$0xff]
    %v45 = vld [vmem:[%s0 + $0x80] sm:$0xff]
    %v46 = vld [vmem:[%s0 + $0x88] sm:$0xff]
    %v47 = vld [vmem:[%s0 + $0x90] sm:$0xff]
    %v48 = vld [vmem:[%s0 + $0x98] sm:$0xff]
    %v49 = vld [vmem:[%s0 + $0xa0] sm:$0xff]
    %v50 = vld [vmem:[%s0 + $0xa8] sm:$0xff]
    %v51 = vld [vmem:[%s0 + $0xb0] sm:$0xff]
    %v52 = vld [vmem:[%s0 + $0xb8] sm:$0xff]
    %v53 = vld [vmem:[%s0 + $0xc0] sm:$0xff]
    %v54 = vld [vmem:[%s0 + $0xc8] sm:$0xff]
    %v55 = vld [vmem:[%s0 + $0xd0] sm:$0xff]
    %v56 = vld [vmem:[%s0 + $0xd8] sm:$0xff]
    %v57 = vld [vmem:[%s0 + $0xe0] sm:$0xff]
    %v58 = vld [vmem:[%s0 + $0xe8] sm:$0xff]
    %v59 = vld [vmem:[%s0 + $0xf0] sm:$0xff]
    %v60 = vld [vmem:[%s0 + $0xf8] sm:$0xff]
    %v61 = vld [vmem:[%s0 + $0x100] sm:$0xff]
    %v62 = vld [vmem:[%s0 + $0x108] sm:$0xff]
    %v63 = vld [vmem:[%s0 + $0x110] sm:$0xff]
    %v64 = vld [vmem:[%s0 + $0x118] sm:$0xff]
    %v65 = vld [vmem:[%s0 + $0x120] sm:$0xff]
    %v66 = vld [vmem:[%s0 + $0x128] sm:$0xff]
    %v67 = vld [vmem:[%s0 + $0x130] sm:$0xff]
    %v68 = vld [vmem:[%s0 + $0x138] sm:$0xff]
    %v69 = vld [vmem:[%s0 + $0x140] sm:$0xff]
    %v70 = vld [vmem:[%s0 + $0x148] sm:$0xff]
    %v71 = vld [vmem:[%s0 + $0x150] sm:$0xff]
    %v72 = vld [vmem:[%s0 + $0x158] sm:$0xff]
    %v73 = vld [vmem:[%s0 + $0x160] sm:$0xff]
    %v74 = vld [vmem:[%s0 + $0x168] sm:$0xff]
    %v75 = vld [vmem:[%s0 + $0x170] sm:$0xff]
    %v76 = vld [vmem:[%s0 + $0x178] sm:$0xff]
    %v77 = vld [vmem:[%s0 + $0x180] sm:$0xff]
    %v78 = vld [vmem:[%s0 + $0x188] sm:$0xff]
    %v79 = vld [vmem:[%s0 + $0x190] sm:$0xff]
    %v80 = vld [vmem:[%s0 + $0x198] sm:$0xff]
    %v81 = vld [vmem:[%s0 + $0x1a0] sm:$0xff]
    %v82 = vld [vmem:[%s0 + $0x1a8] sm:$0xff]
    %v83 = vld [vmem:[%s0 + $0x1b0] sm:$0xff]
    %v84 = vld [vmem:[%s0 + $0x1b8] sm:$0xff]
    %v85 = vld [vmem:[%s0 + $0x1c0] sm:$0xff]
    %v86 = vld [vmem:[%s0 + $0x1c8] sm:$0xff]
    %v87 = vld [vmem:[%s0 + $0x1d0] sm:$0xff]
    %v88 = vld [vmem:[%s0 + $0x1d8] sm:$0xff]
    %v89 = vld [vmem:[%s0 + $0x1e0] sm:$0xff]
    %v90 = vld [vmem:[%s0 + $0x1e8] sm:$0xff]
    %v91 = vld [vmem:[%s0 + $0x1f0] sm:$0xff]
    %v92 = vld [vmem:[%s0 + $0x1f8] sm:$0xff]
    %v93 = vld [vmem:[%s0 + $0x200] sm:$0xff]
    %v94 = vld [vmem:[%s0 + $0x208] sm:$0xff]
    %v95 = vld [vmem:[%s0 + $0x210] sm:$0xff]
    %v96 = vld [vmem:[%s0 + $0x218] sm:$0xff]
    %v97 = vld [vmem:[%s0 + $0x220] sm:$0xff]
    %v98 = vld [vmem:[%s0 + $0x228] sm:$0xff]
    %v99 = vld [vmem:[%s0 + $0x230] sm:$0xff]
    %v100 = vld [vmem:[%s0 + $0x238] sm:$0xff]
    %v101 = vld [vmem:[%s0 + $0x240] sm:$0xff]
    %v102 = vld [vmem:[%s0 + $0x248] sm:$0xff]
    %v103 = vld [vmem:[%s0 + $0x250] sm:$0xff]
    %v104 = vld [vmem:[%s0 + $0x258] sm:$0xff]
    %v105 = vld [vmem:[%s0 + $0x260] sm:$0xff]
    %v106 = vld [vmem:[%s0 + $0x268] sm:$0xff]
    %v107 = vld [vmem:[%s0 + $0x270] sm:$0xff]
    %v108 = vld [vmem:[%s0 + $0x278] sm:$0xff]
    %v109 = vld [vmem:[%s0 + $0x280] sm:$0xff]
    %v110 = vld [vmem:[%s0 + $0x288] sm:$0xff]
    %v111 = vld [vmem:[%s0 + $0x290] sm:$0xff]
    %v112 = vld [vmem:[%s0 + $0x298] sm:$0xff]
    %v113 = vld [vmem:[%s0 + $0x2a0] sm:$0xff]
    %v114 = vld [vmem:[%s0 + $0x2a8] sm:$0xff]
    %v115 = vld [vmem:[%s0 + $0x2b0] sm:$0xff]
    %v116 = vld [vmem:[%s0 + $0x2b8] sm:$0xff]
    %v117 = vld [vmem:[%s0 + $0x2c0] sm:$0xff]
    %v118 = vld [vmem:[%s0 + $0x2c8] sm:$0xff]
    %v119 = vld [vmem:[%s0 + $0x2d0] sm:$0xff]
    %v120 = vld [vmem:[%s0 + $0x2d8] sm:$0xff]
    %v121 = vld [vmem:[%s0 + $0x2e0] sm:$0xff]
    %v122 = vld [vmem:[%s0 + $0x2e8] sm:$0xff]
    %v123 = vld [vmem:[%s0 + $0x2f0] sm:$0xff]
    %v124 = vld [vmem:[%s0 + $0x2f8] sm:$0xff]
    %v125 = vld [vmem:[%s0 + $0x300] sm:$0xff]
    %v126 = vld [vmem:[%s0 + $0x308] sm:$0xff]
    %v127 = vld [vmem:[%s0 + $0x310] sm:$0xff]
    %v128 = vld [vmem:[%s0 + $0x318] sm:$0xff]
    %v129 = vld [vmem:[%s0 + $0x320] sm:$0xff]
    %v130 = vld [vmem:[%s0 + $0x328] sm:$0xff]
    %v131 = vld [vmem:[%s0 + $0x330] sm:$0xff]
    %v132 = vld [vmem:[%s0 + $0x338] sm:$0xff]
    %v133 = vld [vmem:[%s0 + $0x340] sm:$0xff]
    %v134 = vld [vmem:[%s0 + $0x348] sm:$0xff]
    %v135 = vld [vmem:[%s0 + $0x350] sm:$0xff]
    %v136 = vld [vmem:[%s0 + $0x358] sm:$0xff]
    %v137 = vld [vmem:[%s0 + $0x360] sm:$0xff]
    %v138 = vld [vmem:[%s0 + $0x368] sm:$0xff]
    %v139 = vld [vmem:[%s0 + $0x370] sm:$0xff]
    %v140 = vld [vmem:[%s0 + $0x378] sm:$0xff]
    %v141 = vld [vmem:[%s0 + $0x380] sm:$0xff]
    %v142 = vld [vmem:[%s0 + $0x388] sm:$0xff]
    %v143 = vld [vmem:[%s0 + $0x390] sm:$0xff]
    %v144 = vld [vmem:[%s0 + $0x398] sm:$0xff]
    %v145 = vld [vmem:[%s0 + $0x3a0] sm:$0xff]
    %v146 = vld [vmem:[%s0 + $0x3a8] sm:$0xff]
    %v147 = vld [vmem:[%s0 + $0x3b0] sm:$0xff]
    %v148 = vld [vmem:[%s0 + $0x3b8] sm:$0xff]
    %v149 = vld [vmem:[%s0 + $0x3c0] sm:$0xff]
    %v150 = vld [vmem:[%s0 + $0x3c8] sm:$0xff]
    %v151 = vld [vmem:[%s0 + $0x3d0] sm:$0xff]
    %v152 = vld [vmem:[%s0 + $0x3d8] sm:$0xff]
    %v153 = vld [vmem:[%s0 + $0x3e0] sm:$0xff]
    %v154 = vld [vmem:[%s0 + $0x3e8] sm:$0xff]
    %v155 = vld [vmem:[%s0 + $0x3f0] sm:$0xff]
    %v156 = vld [vmem:[%s0 + $0x3f8] sm:$0xff]
    %v158 = vperm.slane %v26, 0
    %vm160 = vcmask 261120
    %v162 = vsel %vm160, %v29, 0
    %v165 = vsel %vm160, %v30, 0
    %v168 = vsel %vm160, %v31, 0
    %v171 = vsel %vm160, %v32, 0
    %v174 = vsel %vm160, %v33, 0
    %v177 = vsel %vm160, %v34, 0
    %v180 = vsel %vm160, %v35, 0
    %v183 = vsel %vm160, %v36, 0
    %v186 = vsel %vm160, %v37, 0
    %v189 = vsel %vm160, %v38, 0
    %v192 = vsel %vm160, %v39, 0
    %v195 = vsel %vm160, %v40, 0
    %v198 = vsel %vm160, %v41, 0
    %v201 = vsel %vm160, %v42, 0
    %v204 = vsel %vm160, %v43, 0
    %v207 = vsel %vm160, %v44, 0
    %v210 = vsel %vm160, %v45, 0
    %v213 = vsel %vm160, %v46, 0
    %v216 = vsel %vm160, %v47, 0
    %v219 = vsel %vm160, %v48, 0
    %v222 = vsel %vm160, %v49, 0
    %v225 = vsel %vm160, %v50, 0
    %v228 = vsel %vm160, %v51, 0
    %v231 = vsel %vm160, %v52, 0
    %v234 = vsel %vm160, %v53, 0
    %v237 = vsel %vm160, %v54, 0
    %v240 = vsel %vm160, %v55, 0
    %v243 = vsel %vm160, %v56, 0
    %v246 = vsel %vm160, %v57, 0
    %v249 = vsel %vm160, %v58, 0
    %v252 = vsel %vm160, %v59, 0
    %v255 = vsel %vm160, %v60, 0
    %v258 = vsel %vm160, %v61, 0
    %v261 = vsel %vm160, %v62, 0
    %v264 = vsel %vm160, %v63, 0
    %v267 = vsel %vm160, %v64, 0
    %v270 = vsel %vm160, %v65, 0
    %v273 = vsel %vm160, %v66, 0
    %v276 = vsel %vm160, %v67, 0
    %v279 = vsel %vm160, %v68, 0
    %v282 = vsel %vm160, %v69, 0
    %v285 = vsel %vm160, %v70, 0
    %v288 = vsel %vm160, %v71, 0
    %v291 = vsel %vm160, %v72, 0
    %v294 = vsel %vm160, %v73, 0
    %v297 = vsel %vm160, %v74, 0
    %v300 = vsel %vm160, %v75, 0
    %v303 = vsel %vm160, %v76, 0
    %v306 = vsel %vm160, %v77, 0
    %v309 = vsel %vm160, %v78, 0
    %v312 = vsel %vm160, %v79, 0
    %v315 = vsel %vm160, %v80, 0
    %v318 = vsel %vm160, %v81, 0
    %v321 = vsel %vm160, %v82, 0
    %v324 = vsel %vm160, %v83, 0
    %v327 = vsel %vm160, %v84, 0
    %v330 = vsel %vm160, %v85, 0
    %v333 = vsel %vm160, %v86, 0
    %v336 = vsel %vm160, %v87, 0
    %v339 = vsel %vm160, %v88, 0
    %v342 = vsel %vm160, %v89, 0
    %v345 = vsel %vm160, %v90, 0
    %v348 = vsel %vm160, %v91, 0
    %v351 = vsel %vm160, %v92, 0
    %v354 = vsel %vm160, %v93, 0
    %v357 = vsel %vm160, %v94, 0
    %v360 = vsel %vm160, %v95, 0
    %v363 = vsel %vm160, %v96, 0
    %v366 = vsel %vm160, %v97, 0
    %v369 = vsel %vm160, %v98, 0
    %v372 = vsel %vm160, %v99, 0
    %v375 = vsel %vm160, %v100, 0
    %v378 = vsel %vm160, %v101, 0
    %v381 = vsel %vm160, %v102, 0
    %v384 = vsel %vm160, %v103, 0
    %v387 = vsel %vm160, %v104, 0
    %v390 = vsel %vm160, %v105, 0
    %v393 = vsel %vm160, %v106, 0
    %v396 = vsel %vm160, %v107, 0
    %v399 = vsel %vm160, %v108, 0
    %v402 = vsel %vm160, %v109, 0
    %v405 = vsel %vm160, %v110, 0
    %v408 = vsel %vm160, %v111, 0
    %v411 = vsel %vm160, %v112, 0
    %v414 = vsel %vm160, %v113, 0
    %v417 = vsel %vm160, %v114, 0
    %v420 = vsel %vm160, %v115, 0
    %v423 = vsel %vm160, %v116, 0
    %v426 = vsel %vm160, %v117, 0
    %v429 = vsel %vm160, %v118, 0
    %v432 = vsel %vm160, %v119, 0
    %v435 = vsel %vm160, %v120, 0
    %v438 = vsel %vm160, %v121, 0
    %v441 = vsel %vm160, %v122, 0
    %v444 = vsel %vm160, %v123, 0
    %v447 = vsel %vm160, %v124, 0
    %v450 = vsel %vm160, %v125, 0
    %v453 = vsel %vm160, %v126, 0
    %v456 = vsel %vm160, %v127, 0
    %v459 = vsel %vm160, %v128, 0
    %v462 = vsel %vm160, %v129, 0
    %v465 = vsel %vm160, %v130, 0
    %v468 = vsel %vm160, %v131, 0
    %v471 = vsel %vm160, %v132, 0
    %v474 = vsel %vm160, %v133, 0
    %v477 = vsel %vm160, %v134, 0
    %v480 = vsel %vm160, %v135, 0
    %v483 = vsel %vm160, %v136, 0
    %v486 = vsel %vm160, %v137, 0
    %v489 = vsel %vm160, %v138, 0
    %v492 = vsel %vm160, %v139, 0
    %v495 = vsel %vm160, %v140, 0
    %v498 = vsel %vm160, %v141, 0
    %v501 = vsel %vm160, %v142, 0
    %v504 = vsel %vm160, %v143, 0
    %v507 = vsel %vm160, %v144, 0
    %v510 = vsel %vm160, %v145, 0
    %v513 = vsel %vm160, %v146, 0
    %v516 = vsel %vm160, %v147, 0
    %v519 = vsel %vm160, %v148, 0
    %v522 = vsel %vm160, %v149, 0
    %v525 = vsel %vm160, %v150, 0
    %v528 = vsel %vm160, %v151, 0
    %v531 = vsel %vm160, %v152, 0
    %v534 = vsel %vm160, %v153, 0
    %v537 = vsel %vm160, %v154, 0
    %v540 = vsel %vm160, %v155, 0
    %v543 = vsel %vm160, %v156, 0
    %545 = vmatpush.msra.mxu0 0.0
    %546 = vmatpush.msra.mxu0 0.0
    %547 = vmatpush.msra.mxu0 0.0
    %548 = vmatpush.msra.mxu0 0.0
    %549 = vmatpush.msra.mxu0 0.0
    %550 = vmatpush.msra.mxu0 0.0
    %551 = vmatpush.msra.mxu0 0.0
    %552 = vmatpush.msra.mxu0 0.0
    %553 = vmatpush.msra.mxu0 0.0
    %554 = vmatpush.msra.mxu0 0.0
    %555 = vmatpush.msra.mxu0 0.0
    %556 = vmatpush.msra.mxu0 0.0
    %557 = vmatpush.msra.mxu0 %v25
    %558 = vmatpush.msra.mxu0 %v24
    %559 = vmatpush.msra.mxu0 %v23
    %560 = vmatpush.msra.mxu0 %v22
    %561 = vmatmul.f32.gmra.mxu0 %v162
    %v562 = vpop.f32.mrf.mxu0
    %v563 = vadd.f32 %v158, %v562
    %564 = vmatmul.f32.gmra.mxu0 %v165
    %v565 = vpop.f32.mrf.mxu0
    %v566 = vadd.f32 %v158, %v565
    %567 = vmatmul.f32.gmra.mxu0 %v168
    %v568 = vpop.f32.mrf.mxu0
    %v569 = vadd.f32 %v158, %v568
    %570 = vmatmul.f32.gmra.mxu0 %v171
    %v571 = vpop.f32.mrf.mxu0
    %v572 = vadd.f32 %v158, %v571
    %573 = vmatmul.f32.gmra.mxu0 %v174
    %v574 = vpop.f32.mrf.mxu0
    %v575 = vadd.f32 %v158, %v574
    %576 = vmatmul.f32.gmra.mxu0 %v177
    %v577 = vpop.f32.mrf.mxu0
    %v578 = vadd.f32 %v158, %v577
    %579 = vmatmul.f32.gmra.mxu0 %v180
    %v580 = vpop.f32.mrf.mxu0
    %v581 = vadd.f32 %v158, %v580
    %582 = vmatmul.f32.gmra.mxu0 %v183
    %v583 = vpop.f32.mrf.mxu0
    %v584 = vadd.f32 %v158, %v583
    %585 = vmatmul.f32.gmra.mxu0 %v186
    %v586 = vpop.f32.mrf.mxu0
    %v587 = vadd.f32 %v158, %v586
    %588 = vmatmul.f32.gmra.mxu0 %v189
    %v589 = vpop.f32.mrf.mxu0
    %v590 = vadd.f32 %v158, %v589
    %591 = vmatmul.f32.gmra.mxu0 %v192
    %v592 = vpop.f32.mrf.mxu0
    %v593 = vadd.f32 %v158, %v592
    %594 = vmatmul.f32.gmra.mxu0 %v195
    %v595 = vpop.f32.mrf.mxu0
    %v596 = vadd.f32 %v158, %v595
    %597 = vmatmul.f32.gmra.mxu0 %v198
    %v598 = vpop.f32.mrf.mxu0
    %v599 = vadd.f32 %v158, %v598
    %600 = vmatmul.f32.gmra.mxu0 %v201
    %v601 = vpop.f32.mrf.mxu0
    %v602 = vadd.f32 %v158, %v601
    %603 = vmatmul.f32.gmra.mxu0 %v204
    %v604 = vpop.f32.mrf.mxu0
    %v605 = vadd.f32 %v158, %v604
    %606 = vmatmul.f32.gmra.mxu0 %v207
    %v607 = vpop.f32.mrf.mxu0
    %v608 = vadd.f32 %v158, %v607
    %609 = vmatmul.f32.gmra.mxu0 %v210
    %v610 = vpop.f32.mrf.mxu0
    %v611 = vadd.f32 %v158, %v610
    %612 = vmatmul.f32.gmra.mxu0 %v213
    %v613 = vpop.f32.mrf.mxu0
    %v614 = vadd.f32 %v158, %v613
    %615 = vmatmul.f32.gmra.mxu0 %v216
    %v616 = vpop.f32.mrf.mxu0
    %v617 = vadd.f32 %v158, %v616
    %618 = vmatmul.f32.gmra.mxu0 %v219
    %v619 = vpop.f32.mrf.mxu0
    %v620 = vadd.f32 %v158, %v619
    %621 = vmatmul.f32.gmra.mxu0 %v222
    %v622 = vpop.f32.mrf.mxu0
    %v623 = vadd.f32 %v158, %v622
    %624 = vmatmul.f32.gmra.mxu0 %v225
    %v625 = vpop.f32.mrf.mxu0
    %v626 = vadd.f32 %v158, %v625
    %627 = vmatmul.f32.gmra.mxu0 %v228
    %v628 = vpop.f32.mrf.mxu0
    %v629 = vadd.f32 %v158, %v628
    %630 = vmatmul.f32.gmra.mxu0 %v231
    %v631 = vpop.f32.mrf.mxu0
    %v632 = vadd.f32 %v158, %v631
    %633 = vmatmul.f32.gmra.mxu0 %v234
    %v634 = vpop.f32.mrf.mxu0
    %v635 = vadd.f32 %v158, %v634
    %636 = vmatmul.f32.gmra.mxu0 %v237
    %v637 = vpop.f32.mrf.mxu0
    %v638 = vadd.f32 %v158, %v637
    %639 = vmatmul.f32.gmra.mxu0 %v240
    %v640 = vpop.f32.mrf.mxu0
    %v641 = vadd.f32 %v158, %v640
    %642 = vmatmul.f32.gmra.mxu0 %v243
    %v643 = vpop.f32.mrf.mxu0
    %v644 = vadd.f32 %v158, %v643
    %645 = vmatmul.f32.gmra.mxu0 %v246
    %v646 = vpop.f32.mrf.mxu0
    %v647 = vadd.f32 %v158, %v646
    %648 = vmatmul.f32.gmra.mxu0 %v249
    %v649 = vpop.f32.mrf.mxu0
    %v650 = vadd.f32 %v158, %v649
    %651 = vmatmul.f32.gmra.mxu0 %v252
    %v652 = vpop.f32.mrf.mxu0
    %v653 = vadd.f32 %v158, %v652
    %654 = vmatmul.f32.gmra.mxu0 %v255
    %v655 = vpop.f32.mrf.mxu0
    %v656 = vadd.f32 %v158, %v655
    %657 = vmatmul.f32.gmra.mxu0 %v258
    %v658 = vpop.f32.mrf.mxu0
    %v659 = vadd.f32 %v158, %v658
    %660 = vmatmul.f32.gmra.mxu0 %v261
    %v661 = vpop.f32.mrf.mxu0
    %v662 = vadd.f32 %v158, %v661
    %663 = vmatmul.f32.gmra.mxu0 %v264
    %v664 = vpop.f32.mrf.mxu0
    %v665 = vadd.f32 %v158, %v664
    %666 = vmatmul.f32.gmra.mxu0 %v267
    %v667 = vpop.f32.mrf.mxu0
    %v668 = vadd.f32 %v158, %v667
    %669 = vmatmul.f32.gmra.mxu0 %v270
    %v670 = vpop.f32.mrf.mxu0
    %v671 = vadd.f32 %v158, %v670
    %672 = vmatmul.f32.gmra.mxu0 %v273
    %v673 = vpop.f32.mrf.mxu0
    %v674 = vadd.f32 %v158, %v673
    %675 = vmatmul.f32.gmra.mxu0 %v276
    %v676 = vpop.f32.mrf.mxu0
    %v677 = vadd.f32 %v158, %v676
    %678 = vmatmul.f32.gmra.mxu0 %v279
    %v679 = vpop.f32.mrf.mxu0
    %v680 = vadd.f32 %v158, %v679
    %681 = vmatmul.f32.gmra.mxu0 %v282
    %v682 = vpop.f32.mrf.mxu0
    %v683 = vadd.f32 %v158, %v682
    %684 = vmatmul.f32.gmra.mxu0 %v285
    %v685 = vpop.f32.mrf.mxu0
    %v686 = vadd.f32 %v158, %v685
    %687 = vmatmul.f32.gmra.mxu0 %v288
    %v688 = vpop.f32.mrf.mxu0
    %v689 = vadd.f32 %v158, %v688
    %690 = vmatmul.f32.gmra.mxu0 %v291
    %v691 = vpop.f32.mrf.mxu0
    %v692 = vadd.f32 %v158, %v691
    %693 = vmatmul.f32.gmra.mxu0 %v294
    %v694 = vpop.f32.mrf.mxu0
    %v695 = vadd.f32 %v158, %v694
    %696 = vmatmul.f32.gmra.mxu0 %v297
    %v697 = vpop.f32.mrf.mxu0
    %v698 = vadd.f32 %v158, %v697
    %699 = vmatmul.f32.gmra.mxu0 %v300
    %v700 = vpop.f32.mrf.mxu0
    %v701 = vadd.f32 %v158, %v700
    %702 = vmatmul.f32.gmra.mxu0 %v303
    %v703 = vpop.f32.mrf.mxu0
    %v704 = vadd.f32 %v158, %v703
    %705 = vmatmul.f32.gmra.mxu0 %v306
    %v706 = vpop.f32.mrf.mxu0
    %v707 = vadd.f32 %v158, %v706
    %708 = vmatmul.f32.gmra.mxu0 %v309
    %v709 = vpop.f32.mrf.mxu0
    %v710 = vadd.f32 %v158, %v709
    %711 = vmatmul.f32.gmra.mxu0 %v312
    %v712 = vpop.f32.mrf.mxu0
    %v713 = vadd.f32 %v158, %v712
    %714 = vmatmul.f32.gmra.mxu0 %v315
    %v715 = vpop.f32.mrf.mxu0
    %v716 = vadd.f32 %v158, %v715
    %717 = vmatmul.f32.gmra.mxu0 %v318
    %v718 = vpop.f32.mrf.mxu0
    %v719 = vadd.f32 %v158, %v718
    %720 = vmatmul.f32.gmra.mxu0 %v321
    %v721 = vpop.f32.mrf.mxu0
    %v722 = vadd.f32 %v158, %v721
    %723 = vmatmul.f32.gmra.mxu0 %v324
    %v724 = vpop.f32.mrf.mxu0
    %v725 = vadd.f32 %v158, %v724
    %726 = vmatmul.f32.gmra.mxu0 %v327
    %v727 = vpop.f32.mrf.mxu0
    %v728 = vadd.f32 %v158, %v727
    %729 = vmatmul.f32.gmra.mxu0 %v330
    %v730 = vpop.f32.mrf.mxu0
    %v731 = vadd.f32 %v158, %v730
    %732 = vmatmul.f32.gmra.mxu0 %v333
    %v733 = vpop.f32.mrf.mxu0
    %v734 = vadd.f32 %v158, %v733
    %735 = vmatmul.f32.gmra.mxu0 %v336
    %v736 = vpop.f32.mrf.mxu0
    %v737 = vadd.f32 %v158, %v736
    %738 = vmatmul.f32.gmra.mxu0 %v339
    %v739 = vpop.f32.mrf.mxu0
    %v740 = vadd.f32 %v158, %v739
    %741 = vmatmul.f32.gmra.mxu0 %v342
    %v742 = vpop.f32.mrf.mxu0
    %v743 = vadd.f32 %v158, %v742
    %744 = vmatmul.f32.gmra.mxu0 %v345
    %v745 = vpop.f32.mrf.mxu0
    %v746 = vadd.f32 %v158, %v745
    %747 = vmatmul.f32.gmra.mxu0 %v348
    %v748 = vpop.f32.mrf.mxu0
    %v749 = vadd.f32 %v158, %v748
    %750 = vmatmul.f32.gmra.mxu0 %v351
    %v751 = vpop.f32.mrf.mxu0
    %v752 = vadd.f32 %v158, %v751
    %753 = vmatmul.f32.gmra.mxu0 %v354
    %v754 = vpop.f32.mrf.mxu0
    %v755 = vadd.f32 %v158, %v754
    %756 = vmatmul.f32.gmra.mxu0 %v357
    %v757 = vpop.f32.mrf.mxu0
    %v758 = vadd.f32 %v158, %v757
    %759 = vmatmul.f32.gmra.mxu0 %v360
    %v760 = vpop.f32.mrf.mxu0
    %v761 = vadd.f32 %v158, %v760
    %762 = vmatmul.f32.gmra.mxu0 %v363
    %v763 = vpop.f32.mrf.mxu0
    %v764 = vadd.f32 %v158, %v763
    %765 = vmatmul.f32.gmra.mxu0 %v366
    %v766 = vpop.f32.mrf.mxu0
    %v767 = vadd.f32 %v158, %v766
    %768 = vmatmul.f32.gmra.mxu0 %v369
    %v769 = vpop.f32.mrf.mxu0
    %v770 = vadd.f32 %v158, %v769
    %771 = vmatmul.f32.gmra.mxu0 %v372
    %v772 = vpop.f32.mrf.mxu0
    %v773 = vadd.f32 %v158, %v772
    %774 = vmatmul.f32.gmra.mxu0 %v375
    %v775 = vpop.f32.mrf.mxu0
    %v776 = vadd.f32 %v158, %v775
    %777 = vmatmul.f32.gmra.mxu0 %v378
    %v778 = vpop.f32.mrf.mxu0
    %v779 = vadd.f32 %v158, %v778
    %780 = vmatmul.f32.gmra.mxu0 %v381
    %v781 = vpop.f32.mrf.mxu0
    %v782 = vadd.f32 %v158, %v781
    %783 = vmatmul.f32.gmra.mxu0 %v384
    %v784 = vpop.f32.mrf.mxu0
    %v785 = vadd.f32 %v158, %v784
    %786 = vmatmul.f32.gmra.mxu0 %v387
    %v787 = vpop.f32.mrf.mxu0
    %v788 = vadd.f32 %v158, %v787
    %789 = vmatmul.f32.gmra.mxu0 %v390
    %v790 = vpop.f32.mrf.mxu0
    %v791 = vadd.f32 %v158, %v790
    %792 = vmatmul.f32.gmra.mxu0 %v393
    %v793 = vpop.f32.mrf.mxu0
    %v794 = vadd.f32 %v158, %v793
    %795 = vmatmul.f32.gmra.mxu0 %v396
    %v796 = vpop.f32.mrf.mxu0
    %v797 = vadd.f32 %v158, %v796
    %798 = vmatmul.f32.gmra.mxu0 %v399
    %v799 = vpop.f32.mrf.mxu0
    %v800 = vadd.f32 %v158, %v799
    %801 = vmatmul.f32.gmra.mxu0 %v402
    %v802 = vpop.f32.mrf.mxu0
    %v803 = vadd.f32 %v158, %v802
    %804 = vmatmul.f32.gmra.mxu0 %v405
    %v805 = vpop.f32.mrf.mxu0
    %v806 = vadd.f32 %v158, %v805
    %807 = vmatmul.f32.gmra.mxu0 %v408
    %v808 = vpop.f32.mrf.mxu0
    %v809 = vadd.f32 %v158, %v808
    %810 = vmatmul.f32.gmra.mxu0 %v411
    %v811 = vpop.f32.mrf.mxu0
    %v812 = vadd.f32 %v158, %v811
    %813 = vmatmul.f32.gmra.mxu0 %v414
    %v814 = vpop.f32.mrf.mxu0
    %v815 = vadd.f32 %v158, %v814
    %816 = vmatmul.f32.gmra.mxu0 %v417
    %v817 = vpop.f32.mrf.mxu0
    %v818 = vadd.f32 %v158, %v817
    %819 = vmatmul.f32.gmra.mxu0 %v420
    %v820 = vpop.f32.mrf.mxu0
    %v821 = vadd.f32 %v158, %v820
    %822 = vmatmul.f32.gmra.mxu0 %v423
    %v823 = vpop.f32.mrf.mxu0
    %v824 = vadd.f32 %v158, %v823
    %825 = vmatmul.f32.gmra.mxu0 %v426
    %v826 = vpop.f32.mrf.mxu0
    %v827 = vadd.f32 %v158, %v826
    %828 = vmatmul.f32.gmra.mxu0 %v429
    %v829 = vpop.f32.mrf.mxu0
    %v830 = vadd.f32 %v158, %v829
    %831 = vmatmul.f32.gmra.mxu0 %v432
    %v832 = vpop.f32.mrf.mxu0
    %v833 = vadd.f32 %v158, %v832
    %834 = vmatmul.f32.gmra.mxu0 %v435
    %v835 = vpop.f32.mrf.mxu0
    %v836 = vadd.f32 %v158, %v835
    %837 = vmatmul.f32.gmra.mxu0 %v438
    %v838 = vpop.f32.mrf.mxu0
    %v839 = vadd.f32 %v158, %v838
    %840 = vmatmul.f32.gmra.mxu0 %v441
    %v841 = vpop.f32.mrf.mxu0
    %v842 = vadd.f32 %v158, %v841
    %843 = vmatmul.f32.gmra.mxu0 %v444
    %v844 = vpop.f32.mrf.mxu0
    %v845 = vadd.f32 %v158, %v844
    %846 = vmatmul.f32.gmra.mxu0 %v447
    %v847 = vpop.f32.mrf.mxu0
    %v848 = vadd.f32 %v158, %v847
    %849 = vmatmul.f32.gmra.mxu0 %v450
    %v850 = vpop.f32.mrf.mxu0
    %v851 = vadd.f32 %v158, %v850
    %852 = vmatmul.f32.gmra.mxu0 %v453
    %v853 = vpop.f32.mrf.mxu0
    %v854 = vadd.f32 %v158, %v853
    %855 = vmatmul.f32.gmra.mxu0 %v456
    %v856 = vpop.f32.mrf.mxu0
    %v857 = vadd.f32 %v158, %v856
    %858 = vmatmul.f32.gmra.mxu0 %v459
    %v859 = vpop.f32.mrf.mxu0
    %v860 = vadd.f32 %v158, %v859
    %861 = vmatmul.f32.gmra.mxu0 %v462
    %v862 = vpop.f32.mrf.mxu0
    %v863 = vadd.f32 %v158, %v862
    %864 = vmatmul.f32.gmra.mxu0 %v465
    %v865 = vpop.f32.mrf.mxu0
    %v866 = vadd.f32 %v158, %v865
    %867 = vmatmul.f32.gmra.mxu0 %v468
    %v868 = vpop.f32.mrf.mxu0
    %v869 = vadd.f32 %v158, %v868
    %870 = vmatmul.f32.gmra.mxu0 %v471
    %v871 = vpop.f32.mrf.mxu0
    %v872 = vadd.f32 %v158, %v871
    %873 = vmatmul.f32.gmra.mxu0 %v474
    %v874 = vpop.f32.mrf.mxu0
    %v875 = vadd.f32 %v158, %v874
    %876 = vmatmul.f32.gmra.mxu0 %v477
    %v877 = vpop.f32.mrf.mxu0
    %v878 = vadd.f32 %v158, %v877
    %879 = vmatmul.f32.gmra.mxu0 %v480
    %v880 = vpop.f32.mrf.mxu0
    %v881 = vadd.f32 %v158, %v880
    %882 = vmatmul.f32.gmra.mxu0 %v483
    %v883 = vpop.f32.mrf.mxu0
    %v884 = vadd.f32 %v158, %v883
    %885 = vmatmul.f32.gmra.mxu0 %v486
    %v886 = vpop.f32.mrf.mxu0
    %v887 = vadd.f32 %v158, %v886
    %888 = vmatmul.f32.gmra.mxu0 %v489
    %v889 = vpop.f32.mrf.mxu0
    %v890 = vadd.f32 %v158, %v889
    %891 = vmatmul.f32.gmra.mxu0 %v492
    %v892 = vpop.f32.mrf.mxu0
    %v893 = vadd.f32 %v158, %v892
    %894 = vmatmul.f32.gmra.mxu0 %v495
    %v895 = vpop.f32.mrf.mxu0
    %v896 = vadd.f32 %v158, %v895
    %897 = vmatmul.f32.gmra.mxu0 %v498
    %v898 = vpop.f32.mrf.mxu0
    %v899 = vadd.f32 %v158, %v898
    %900 = vmatmul.f32.gmra.mxu0 %v501
    %v901 = vpop.f32.mrf.mxu0
    %v902 = vadd.f32 %v158, %v901
    %903 = vmatmul.f32.gmra.mxu0 %v504
    %v904 = vpop.f32.mrf.mxu0
    %v905 = vadd.f32 %v158, %v904
    %906 = vmatmul.f32.gmra.mxu0 %v507
    %v907 = vpop.f32.mrf.mxu0
    %v908 = vadd.f32 %v158, %v907
    %909 = vmatmul.f32.gmra.mxu0 %v510
    %v910 = vpop.f32.mrf.mxu0
    %v911 = vadd.f32 %v158, %v910
    %912 = vmatmul.f32.gmra.mxu0 %v513
    %v913 = vpop.f32.mrf.mxu0
    %v914 = vadd.f32 %v158, %v913
    %915 = vmatmul.f32.gmra.mxu0 %v516
    %v916 = vpop.f32.mrf.mxu0
    %v917 = vadd.f32 %v158, %v916
    %918 = vmatmul.f32.gmra.mxu0 %v519
    %v919 = vpop.f32.mrf.mxu0
    %v920 = vadd.f32 %v158, %v919
    %921 = vmatmul.f32.gmra.mxu0 %v522
    %v922 = vpop.f32.mrf.mxu0
    %v923 = vadd.f32 %v158, %v922
    %924 = vmatmul.f32.gmra.mxu0 %v525
    %v925 = vpop.f32.mrf.mxu0
    %v926 = vadd.f32 %v158, %v925
    %927 = vmatmul.f32.gmra.mxu0 %v528
    %v928 = vpop.f32.mrf.mxu0
    %v929 = vadd.f32 %v158, %v928
    %930 = vmatmul.f32.gmra.mxu0 %v531
    %v931 = vpop.f32.mrf.mxu0
    %v932 = vadd.f32 %v158, %v931
    %933 = vmatmul.f32.gmra.mxu0 %v534
    %v934 = vpop.f32.mrf.mxu0
    %v935 = vadd.f32 %v158, %v934
    %936 = vmatmul.f32.gmra.mxu0 %v537
    %v937 = vpop.f32.mrf.mxu0
    %v938 = vadd.f32 %v158, %v937
    %939 = vmatmul.f32.gmra.mxu0 %v540
    %v940 = vpop.f32.mrf.mxu0
    %v941 = vadd.f32 %v158, %v940
    %942 = vmatmul.f32.gmra.mxu0 %v543
    %v943 = vpop.f32.mrf.mxu0
    %v944 = vadd.f32 %v158, %v943
    %945 = vdwg.mxu0
    %v946 = vmax.f32 %v563, 0.0
    %v947 = vmax.f32 %v566, 0.0
    %v948 = vmax.f32 %v569, 0.0
    %v949 = vmax.f32 %v572, 0.0
    %v950 = vmax.f32 %v575, 0.0
    %v951 = vmax.f32 %v578, 0.0
    %v952 = vmax.f32 %v581, 0.0
    %v953 = vmax.f32 %v584, 0.0
    %v954 = vmax.f32 %v587, 0.0
    %v955 = vmax.f32 %v590, 0.0
    %v956 = vmax.f32 %v593, 0.0
    %v957 = vmax.f32 %v596, 0.0
    %v958 = vmax.f32 %v599, 0.0
    %v959 = vmax.f32 %v602, 0.0
    %v960 = vmax.f32 %v605, 0.0
    %v961 = vmax.f32 %v608, 0.0
    %v962 = vmax.f32 %v611, 0.0
    %v963 = vmax.f32 %v614, 0.0
    %v964 = vmax.f32 %v617, 0.0
    %v965 = vmax.f32 %v620, 0.0
    %v966 = vmax.f32 %v623, 0.0
    %v967 = vmax.f32 %v626, 0.0
    %v968 = vmax.f32 %v629, 0.0
    %v969 = vmax.f32 %v632, 0.0
    %v970 = vmax.f32 %v635, 0.0
    %v971 = vmax.f32 %v638, 0.0
    %v972 = vmax.f32 %v641, 0.0
    %v973 = vmax.f32 %v644, 0.0
    %v974 = vmax.f32 %v647, 0.0
    %v975 = vmax.f32 %v650, 0.0
    %v976 = vmax.f32 %v653, 0.0
    %v977 = vmax.f32 %v656, 0.0
    %v978 = vmax.f32 %v659, 0.0
    %v979 = vmax.f32 %v662, 0.0
    %v980 = vmax.f32 %v665, 0.0
    %v981 = vmax.f32 %v668, 0.0
    %v982 = vmax.f32 %v671, 0.0
    %v983 = vmax.f32 %v674, 0.0
    %v984 = vmax.f32 %v677, 0.0
    %v985 = vmax.f32 %v680, 0.0
    %v986 = vmax.f32 %v683, 0.0
    %v987 = vmax.f32 %v686, 0.0
    %v988 = vmax.f32 %v689, 0.0
    %v989 = vmax.f32 %v692, 0.0
    %v990 = vmax.f32 %v695, 0.0
    %v991 = vmax.f32 %v698, 0.0
    %v992 = vmax.f32 %v701, 0.0
    %v993 = vmax.f32 %v704, 0.0
    %v994 = vmax.f32 %v707, 0.0
    %v995 = vmax.f32 %v710, 0.0
    %v996 = vmax.f32 %v713, 0.0
    %v997 = vmax.f32 %v716, 0.0
    %v998 = vmax.f32 %v719, 0.0
    %v999 = vmax.f32 %v722, 0.0
    %v1000 = vmax.f32 %v725, 0.0
    %v1001 = vmax.f32 %v728, 0.0
    %v1002 = vmax.f32 %v731, 0.0
    %v1003 = vmax.f32 %v734, 0.0
    %v1004 = vmax.f32 %v737, 0.0
    %v1005 = vmax.f32 %v740, 0.0
    %v1006 = vmax.f32 %v743, 0.0
    %v1007 = vmax.f32 %v746, 0.0
    %v1008 = vmax.f32 %v749, 0.0
    %v1009 = vmax.f32 %v752, 0.0
    %v1010 = vmax.f32 %v755, 0.0
    %v1011 = vmax.f32 %v758, 0.0
    %v1012 = vmax.f32 %v761, 0.0
    %v1013 = vmax.f32 %v764, 0.0
    %v1014 = vmax.f32 %v767, 0.0
    %v1015 = vmax.f32 %v770, 0.0
    %v1016 = vmax.f32 %v773, 0.0
    %v1017 = vmax.f32 %v776, 0.0
    %v1018 = vmax.f32 %v779, 0.0
    %v1019 = vmax.f32 %v782, 0.0
    %v1020 = vmax.f32 %v785, 0.0
    %v1021 = vmax.f32 %v788, 0.0
    %v1022 = vmax.f32 %v791, 0.0
    %v1023 = vmax.f32 %v794, 0.0
    %v1024 = vmax.f32 %v797, 0.0
    %v1025 = vmax.f32 %v800, 0.0
    %v1026 = vmax.f32 %v803, 0.0
    %v1027 = vmax.f32 %v806, 0.0
    %v1028 = vmax.f32 %v809, 0.0
    %v1029 = vmax.f32 %v812, 0.0
    %v1030 = vmax.f32 %v815, 0.0
    %v1031 = vmax.f32 %v818, 0.0
    %v1032 = vmax.f32 %v821, 0.0
    %v1033 = vmax.f32 %v824, 0.0
    %v1034 = vmax.f32 %v827, 0.0
    %v1035 = vmax.f32 %v830, 0.0
    %v1036 = vmax.f32 %v833, 0.0
    %v1037 = vmax.f32 %v836, 0.0
    %v1038 = vmax.f32 %v839, 0.0
    %v1039 = vmax.f32 %v842, 0.0
    %v1040 = vmax.f32 %v845, 0.0
    %v1041 = vmax.f32 %v848, 0.0
    %v1042 = vmax.f32 %v851, 0.0
    %v1043 = vmax.f32 %v854, 0.0
    %v1044 = vmax.f32 %v857, 0.0
    %v1045 = vmax.f32 %v860, 0.0
    %v1046 = vmax.f32 %v863, 0.0
    %v1047 = vmax.f32 %v866, 0.0
    %v1048 = vmax.f32 %v869, 0.0
    %v1049 = vmax.f32 %v872, 0.0
    %v1050 = vmax.f32 %v875, 0.0
    %v1051 = vmax.f32 %v878, 0.0
    %v1052 = vmax.f32 %v881, 0.0
    %v1053 = vmax.f32 %v884, 0.0
    %v1054 = vmax.f32 %v887, 0.0
    %v1055 = vmax.f32 %v890, 0.0
    %v1056 = vmax.f32 %v893, 0.0
    %v1057 = vmax.f32 %v896, 0.0
    %v1058 = vmax.f32 %v899, 0.0
    %v1059 = vmax.f32 %v902, 0.0
    %v1060 = vmax.f32 %v905, 0.0
    %v1061 = vmax.f32 %v908, 0.0
    %v1062 = vmax.f32 %v911, 0.0
    %v1063 = vmax.f32 %v914, 0.0
    %v1064 = vmax.f32 %v917, 0.0
    %v1065 = vmax.f32 %v920, 0.0
    %v1066 = vmax.f32 %v923, 0.0
    %v1067 = vmax.f32 %v926, 0.0
    %v1068 = vmax.f32 %v929, 0.0
    %v1069 = vmax.f32 %v932, 0.0
    %v1070 = vmax.f32 %v935, 0.0
    %v1071 = vmax.f32 %v938, 0.0
    %v1072 = vmax.f32 %v941, 0.0
    %v1073 = vmax.f32 %v944, 0.0
    %v1075 = vperm.slane %v27, 0
    %v1077 = vmul.f32 %v946, %v1075
    %v1078 = vmul.f32 %v947, %v1075
    %v1079 = vmul.f32 %v948, %v1075
    %v1080 = vmul.f32 %v949, %v1075
    %v1081 = vmul.f32 %v950, %v1075
    %v1082 = vmul.f32 %v951, %v1075
    %v1083 = vmul.f32 %v952, %v1075
    %v1084 = vmul.f32 %v953, %v1075
    %v1085 = vmul.f32 %v954, %v1075
    %v1086 = vmul.f32 %v955, %v1075
    %v1087 = vmul.f32 %v956, %v1075
    %v1088 = vmul.f32 %v957, %v1075
    %v1089 = vmul.f32 %v958, %v1075
    %v1090 = vmul.f32 %v959, %v1075
    %v1091 = vmul.f32 %v960, %v1075
    %v1092 = vmul.f32 %v961, %v1075
    %v1093 = vmul.f32 %v962, %v1075
    %v1094 = vmul.f32 %v963, %v1075
    %v1095 = vmul.f32 %v964, %v1075
    %v1096 = vmul.f32 %v965, %v1075
    %v1097 = vmul.f32 %v966, %v1075
    %v1098 = vmul.f32 %v967, %v1075
    %v1099 = vmul.f32 %v968, %v1075
    %v1100 = vmul.f32 %v969, %v1075
    %v1101 = vmul.f32 %v970, %v1075
    %v1102 = vmul.f32 %v971, %v1075
    %v1103 = vmul.f32 %v972, %v1075
    %v1104 = vmul.f32 %v973, %v1075
    %v1105 = vmul.f32 %v974, %v1075
    %v1106 = vmul.f32 %v975, %v1075
    %v1107 = vmul.f32 %v976, %v1075
    %v1108 = vmul.f32 %v977, %v1075
    %v1109 = vmul.f32 %v978, %v1075
    %v1110 = vmul.f32 %v979, %v1075
    %v1111 = vmul.f32 %v980, %v1075
    %v1112 = vmul.f32 %v981, %v1075
    %v1113 = vmul.f32 %v982, %v1075
    %v1114 = vmul.f32 %v983, %v1075
    %v1115 = vmul.f32 %v984, %v1075
    %v1116 = vmul.f32 %v985, %v1075
    %v1117 = vmul.f32 %v986, %v1075
    %v1118 = vmul.f32 %v987, %v1075
    %v1119 = vmul.f32 %v988, %v1075
    %v1120 = vmul.f32 %v989, %v1075
    %v1121 = vmul.f32 %v990, %v1075
    %v1122 = vmul.f32 %v991, %v1075
    %v1123 = vmul.f32 %v992, %v1075
    %v1124 = vmul.f32 %v993, %v1075
    %v1125 = vmul.f32 %v994, %v1075
    %v1126 = vmul.f32 %v995, %v1075
    %v1127 = vmul.f32 %v996, %v1075
    %v1128 = vmul.f32 %v997, %v1075
    %v1129 = vmul.f32 %v998, %v1075
    %v1130 = vmul.f32 %v999, %v1075
    %v1131 = vmul.f32 %v1000, %v1075
    %v1132 = vmul.f32 %v1001, %v1075
    %v1133 = vmul.f32 %v1002, %v1075
    %v1134 = vmul.f32 %v1003, %v1075
    %v1135 = vmul.f32 %v1004, %v1075
    %v1136 = vmul.f32 %v1005, %v1075
    %v1137 = vmul.f32 %v1006, %v1075
    %v1138 = vmul.f32 %v1007, %v1075
    %v1139 = vmul.f32 %v1008, %v1075
    %v1140 = vmul.f32 %v1009, %v1075
    %v1141 = vmul.f32 %v1010, %v1075
    %v1142 = vmul.f32 %v1011, %v1075
    %v1143 = vmul.f32 %v1012, %v1075
    %v1144 = vmul.f32 %v1013, %v1075
    %v1145 = vmul.f32 %v1014, %v1075
    %v1146 = vmul.f32 %v1015, %v1075
    %v1147 = vmul.f32 %v1016, %v1075
    %v1148 = vmul.f32 %v1017, %v1075
    %v1149 = vmul.f32 %v1018, %v1075
    %v1150 = vmul.f32 %v1019, %v1075
    %v1151 = vmul.f32 %v1020, %v1075
    %v1152 = vmul.f32 %v1021, %v1075
    %v1153 = vmul.f32 %v1022, %v1075
    %v1154 = vmul.f32 %v1023, %v1075
    %v1155 = vmul.f32 %v1024, %v1075
    %v1156 = vmul.f32 %v1025, %v1075
    %v1157 = vmul.f32 %v1026, %v1075
    %v1158 = vmul.f32 %v1027, %v1075
    %v1159 = vmul.f32 %v1028, %v1075
    %v1160 = vmul.f32 %v1029, %v1075
    %v1161 = vmul.f32 %v1030, %v1075
    %v1162 = vmul.f32 %v1031, %v1075
    %v1163 = vmul.f32 %v1032, %v1075
    %v1164 = vmul.f32 %v1033, %v1075
    %v1165 = vmul.f32 %v1034, %v1075
    %v1166 = vmul.f32 %v1035, %v1075
    %v1167 = vmul.f32 %v1036, %v1075
    %v1168 = vmul.f32 %v1037, %v1075
    %v1169 = vmul.f32 %v1038, %v1075
    %v1170 = vmul.f32 %v1039, %v1075
    %v1171 = vmul.f32 %v1040, %v1075
    %v1172 = vmul.f32 %v1041, %v1075
    %v1173 = vmul.f32 %v1042, %v1075
    %v1174 = vmul.f32 %v1043, %v1075
    %v1175 = vmul.f32 %v1044, %v1075
    %v1176 = vmul.f32 %v1045, %v1075
    %v1177 = vmul.f32 %v1046, %v1075
    %v1178 = vmul.f32 %v1047, %v1075
    %v1179 = vmul.f32 %v1048, %v1075
    %v1180 = vmul.f32 %v1049, %v1075
    %v1181 = vmul.f32 %v1050, %v1075
    %v1182 = vmul.f32 %v1051, %v1075
    %v1183 = vmul.f32 %v1052, %v1075
    %v1184 = vmul.f32 %v1053, %v1075
    %v1185 = vmul.f32 %v1054, %v1075
    %v1186 = vmul.f32 %v1055, %v1075
    %v1187 = vmul.f32 %v1056, %v1075
    %v1188 = vmul.f32 %v1057, %v1075
    %v1189 = vmul.f32 %v1058, %v1075
    %v1190 = vmul.f32 %v1059, %v1075
    %v1191 = vmul.f32 %v1060, %v1075
    %v1192 = vmul.f32 %v1061, %v1075
    %v1193 = vmul.f32 %v1062, %v1075
    %v1194 = vmul.f32 %v1063, %v1075
    %v1195 = vmul.f32 %v1064, %v1075
    %v1196 = vmul.f32 %v1065, %v1075
    %v1197 = vmul.f32 %v1066, %v1075
    %v1198 = vmul.f32 %v1067, %v1075
    %v1199 = vmul.f32 %v1068, %v1075
    %v1200 = vmul.f32 %v1069, %v1075
    %v1201 = vmul.f32 %v1070, %v1075
    %v1202 = vmul.f32 %v1071, %v1075
    %v1203 = vmul.f32 %v1072, %v1075
    %v1204 = vmul.f32 %v1073, %v1075
    %1205 = vadd.xlane.f32.xlu0 %v1077
    %v1206 = vpop.xlane.xlu0 %1205
    %1207 = vadd.xlane.f32.xlu0 %v1078
    %v1208 = vpop.xlane.xlu0 %1207
    %1209 = vadd.xlane.f32.xlu0 %v1079
    %v1210 = vpop.xlane.xlu0 %1209
    %1211 = vadd.xlane.f32.xlu0 %v1080
    %v1212 = vpop.xlane.xlu0 %1211
    %1213 = vadd.xlane.f32.xlu0 %v1081
    %v1214 = vpop.xlane.xlu0 %1213
    %1215 = vadd.xlane.f32.xlu0 %v1082
    %v1216 = vpop.xlane.xlu0 %1215
    %1217 = vadd.xlane.f32.xlu0 %v1083
    %v1218 = vpop.xlane.xlu0 %1217
    %1219 = vadd.xlane.f32.xlu0 %v1084
    %v1220 = vpop.xlane.xlu0 %1219
    %1221 = vadd.xlane.f32.xlu0 %v1085
    %v1222 = vpop.xlane.xlu0 %1221
    %1223 = vadd.xlane.f32.xlu0 %v1086
    %v1224 = vpop.xlane.xlu0 %1223
    %1225 = vadd.xlane.f32.xlu0 %v1087
    %v1226 = vpop.xlane.xlu0 %1225
    %1227 = vadd.xlane.f32.xlu0 %v1088
    %v1228 = vpop.xlane.xlu0 %1227
    %1229 = vadd.xlane.f32.xlu0 %v1089
    %v1230 = vpop.xlane.xlu0 %1229
    %1231 = vadd.xlane.f32.xlu0 %v1090
    %v1232 = vpop.xlane.xlu0 %1231
    %1233 = vadd.xlane.f32.xlu0 %v1091
    %v1234 = vpop.xlane.xlu0 %1233
    %1235 = vadd.xlane.f32.xlu0 %v1092
    %v1236 = vpop.xlane.xlu0 %1235
    %1237 = vadd.xlane.f32.xlu0 %v1093
    %v1238 = vpop.xlane.xlu0 %1237
    %1239 = vadd.xlane.f32.xlu0 %v1094
    %v1240 = vpop.xlane.xlu0 %1239
    %1241 = vadd.xlane.f32.xlu0 %v1095
    %v1242 = vpop.xlane.xlu0 %1241
    %1243 = vadd.xlane.f32.xlu0 %v1096
    %v1244 = vpop.xlane.xlu0 %1243
    %1245 = vadd.xlane.f32.xlu0 %v1097
    %v1246 = vpop.xlane.xlu0 %1245
    %1247 = vadd.xlane.f32.xlu0 %v1098
    %v1248 = vpop.xlane.xlu0 %1247
    %1249 = vadd.xlane.f32.xlu0 %v1099
    %v1250 = vpop.xlane.xlu0 %1249
    %1251 = vadd.xlane.f32.xlu0 %v1100
    %v1252 = vpop.xlane.xlu0 %1251
    %1253 = vadd.xlane.f32.xlu0 %v1101
    %v1254 = vpop.xlane.xlu0 %1253
    %1255 = vadd.xlane.f32.xlu0 %v1102
    %v1256 = vpop.xlane.xlu0 %1255
    %1257 = vadd.xlane.f32.xlu0 %v1103
    %v1258 = vpop.xlane.xlu0 %1257
    %1259 = vadd.xlane.f32.xlu0 %v1104
    %v1260 = vpop.xlane.xlu0 %1259
    %1261 = vadd.xlane.f32.xlu0 %v1105
    %v1262 = vpop.xlane.xlu0 %1261
    %1263 = vadd.xlane.f32.xlu0 %v1106
    %v1264 = vpop.xlane.xlu0 %1263
    %1265 = vadd.xlane.f32.xlu0 %v1107
    %v1266 = vpop.xlane.xlu0 %1265
    %1267 = vadd.xlane.f32.xlu0 %v1108
    %v1268 = vpop.xlane.xlu0 %1267
    %1269 = vadd.xlane.f32.xlu0 %v1109
    %v1270 = vpop.xlane.xlu0 %1269
    %1271 = vadd.xlane.f32.xlu0 %v1110
    %v1272 = vpop.xlane.xlu0 %1271
    %1273 = vadd.xlane.f32.xlu0 %v1111
    %v1274 = vpop.xlane.xlu0 %1273
    %1275 = vadd.xlane.f32.xlu0 %v1112
    %v1276 = vpop.xlane.xlu0 %1275
    %1277 = vadd.xlane.f32.xlu0 %v1113
    %v1278 = vpop.xlane.xlu0 %1277
    %1279 = vadd.xlane.f32.xlu0 %v1114
    %v1280 = vpop.xlane.xlu0 %1279
    %1281 = vadd.xlane.f32.xlu0 %v1115
    %v1282 = vpop.xlane.xlu0 %1281
    %1283 = vadd.xlane.f32.xlu0 %v1116
    %v1284 = vpop.xlane.xlu0 %1283
    %1285 = vadd.xlane.f32.xlu0 %v1117
    %v1286 = vpop.xlane.xlu0 %1285
    %1287 = vadd.xlane.f32.xlu0 %v1118
    %v1288 = vpop.xlane.xlu0 %1287
    %1289 = vadd.xlane.f32.xlu0 %v1119
    %v1290 = vpop.xlane.xlu0 %1289
    %1291 = vadd.xlane.f32.xlu0 %v1120
    %v1292 = vpop.xlane.xlu0 %1291
    %1293 = vadd.xlane.f32.xlu0 %v1121
    %v1294 = vpop.xlane.xlu0 %1293
    %1295 = vadd.xlane.f32.xlu0 %v1122
    %v1296 = vpop.xlane.xlu0 %1295
    %1297 = vadd.xlane.f32.xlu0 %v1123
    %v1298 = vpop.xlane.xlu0 %1297
    %1299 = vadd.xlane.f32.xlu0 %v1124
    %v1300 = vpop.xlane.xlu0 %1299
    %1301 = vadd.xlane.f32.xlu0 %v1125
    %v1302 = vpop.xlane.xlu0 %1301
    %1303 = vadd.xlane.f32.xlu0 %v1126
    %v1304 = vpop.xlane.xlu0 %1303
    %1305 = vadd.xlane.f32.xlu0 %v1127
    %v1306 = vpop.xlane.xlu0 %1305
    %1307 = vadd.xlane.f32.xlu0 %v1128
    %v1308 = vpop.xlane.xlu0 %1307
    %1309 = vadd.xlane.f32.xlu0 %v1129
    %v1310 = vpop.xlane.xlu0 %1309
    %1311 = vadd.xlane.f32.xlu0 %v1130
    %v1312 = vpop.xlane.xlu0 %1311
    %1313 = vadd.xlane.f32.xlu0 %v1131
    %v1314 = vpop.xlane.xlu0 %1313
    %1315 = vadd.xlane.f32.xlu0 %v1132
    %v1316 = vpop.xlane.xlu0 %1315
    %1317 = vadd.xlane.f32.xlu0 %v1133
    %v1318 = vpop.xlane.xlu0 %1317
    %1319 = vadd.xlane.f32.xlu0 %v1134
    %v1320 = vpop.xlane.xlu0 %1319
    %1321 = vadd.xlane.f32.xlu0 %v1135
    %v1322 = vpop.xlane.xlu0 %1321
    %1323 = vadd.xlane.f32.xlu0 %v1136
    %v1324 = vpop.xlane.xlu0 %1323
    %1325 = vadd.xlane.f32.xlu0 %v1137
    %v1326 = vpop.xlane.xlu0 %1325
    %1327 = vadd.xlane.f32.xlu0 %v1138
    %v1328 = vpop.xlane.xlu0 %1327
    %1329 = vadd.xlane.f32.xlu0 %v1139
    %v1330 = vpop.xlane.xlu0 %1329
    %1331 = vadd.xlane.f32.xlu0 %v1140
    %v1332 = vpop.xlane.xlu0 %1331
    %1333 = vadd.xlane.f32.xlu0 %v1141
    %v1334 = vpop.xlane.xlu0 %1333
    %1335 = vadd.xlane.f32.xlu0 %v1142
    %v1336 = vpop.xlane.xlu0 %1335
    %1337 = vadd.xlane.f32.xlu0 %v1143
    %v1338 = vpop.xlane.xlu0 %1337
    %1339 = vadd.xlane.f32.xlu0 %v1144
    %v1340 = vpop.xlane.xlu0 %1339
    %1341 = vadd.xlane.f32.xlu0 %v1145
    %v1342 = vpop.xlane.xlu0 %1341
    %1343 = vadd.xlane.f32.xlu0 %v1146
    %v1344 = vpop.xlane.xlu0 %1343
    %1345 = vadd.xlane.f32.xlu0 %v1147
    %v1346 = vpop.xlane.xlu0 %1345
    %1347 = vadd.xlane.f32.xlu0 %v1148
    %v1348 = vpop.xlane.xlu0 %1347
    %1349 = vadd.xlane.f32.xlu0 %v1149
    %v1350 = vpop.xlane.xlu0 %1349
    %1351 = vadd.xlane.f32.xlu0 %v1150
    %v1352 = vpop.xlane.xlu0 %1351
    %1353 = vadd.xlane.f32.xlu0 %v1151
    %v1354 = vpop.xlane.xlu0 %1353
    %1355 = vadd.xlane.f32.xlu0 %v1152
    %v1356 = vpop.xlane.xlu0 %1355
    %1357 = vadd.xlane.f32.xlu0 %v1153
    %v1358 = vpop.xlane.xlu0 %1357
    %1359 = vadd.xlane.f32.xlu0 %v1154
    %v1360 = vpop.xlane.xlu0 %1359
    %1361 = vadd.xlane.f32.xlu0 %v1155
    %v1362 = vpop.xlane.xlu0 %1361
    %1363 = vadd.xlane.f32.xlu0 %v1156
    %v1364 = vpop.xlane.xlu0 %1363
    %1365 = vadd.xlane.f32.xlu0 %v1157
    %v1366 = vpop.xlane.xlu0 %1365
    %1367 = vadd.xlane.f32.xlu0 %v1158
    %v1368 = vpop.xlane.xlu0 %1367
    %1369 = vadd.xlane.f32.xlu0 %v1159
    %v1370 = vpop.xlane.xlu0 %1369
    %1371 = vadd.xlane.f32.xlu0 %v1160
    %v1372 = vpop.xlane.xlu0 %1371
    %1373 = vadd.xlane.f32.xlu0 %v1161
    %v1374 = vpop.xlane.xlu0 %1373
    %1375 = vadd.xlane.f32.xlu0 %v1162
    %v1376 = vpop.xlane.xlu0 %1375
    %1377 = vadd.xlane.f32.xlu0 %v1163
    %v1378 = vpop.xlane.xlu0 %1377
    %1379 = vadd.xlane.f32.xlu0 %v1164
    %v1380 = vpop.xlane.xlu0 %1379
    %1381 = vadd.xlane.f32.xlu0 %v1165
    %v1382 = vpop.xlane.xlu0 %1381
    %1383 = vadd.xlane.f32.xlu0 %v1166
    %v1384 = vpop.xlane.xlu0 %1383
    %1385 = vadd.xlane.f32.xlu0 %v1167
    %v1386 = vpop.xlane.xlu0 %1385
    %1387 = vadd.xlane.f32.xlu0 %v1168
    %v1388 = vpop.xlane.xlu0 %1387
    %1389 = vadd.xlane.f32.xlu0 %v1169
    %v1390 = vpop.xlane.xlu0 %1389
    %1391 = vadd.xlane.f32.xlu0 %v1170
    %v1392 = vpop.xlane.xlu0 %1391
    %1393 = vadd.xlane.f32.xlu0 %v1171
    %v1394 = vpop.xlane.xlu0 %1393
    %1395 = vadd.xlane.f32.xlu0 %v1172
    %v1396 = vpop.xlane.xlu0 %1395
    %1397 = vadd.xlane.f32.xlu0 %v1173
    %v1398 = vpop.xlane.xlu0 %1397
    %1399 = vadd.xlane.f32.xlu0 %v1174
    %v1400 = vpop.xlane.xlu0 %1399
    %1401 = vadd.xlane.f32.xlu0 %v1175
    %v1402 = vpop.xlane.xlu0 %1401
    %1403 = vadd.xlane.f32.xlu0 %v1176
    %v1404 = vpop.xlane.xlu0 %1403
    %1405 = vadd.xlane.f32.xlu0 %v1177
    %v1406 = vpop.xlane.xlu0 %1405
    %1407 = vadd.xlane.f32.xlu0 %v1178
    %v1408 = vpop.xlane.xlu0 %1407
    %1409 = vadd.xlane.f32.xlu0 %v1179
    %v1410 = vpop.xlane.xlu0 %1409
    %1411 = vadd.xlane.f32.xlu0 %v1180
    %v1412 = vpop.xlane.xlu0 %1411
    %1413 = vadd.xlane.f32.xlu0 %v1181
    %v1414 = vpop.xlane.xlu0 %1413
    %1415 = vadd.xlane.f32.xlu0 %v1182
    %v1416 = vpop.xlane.xlu0 %1415
    %1417 = vadd.xlane.f32.xlu0 %v1183
    %v1418 = vpop.xlane.xlu0 %1417
    %1419 = vadd.xlane.f32.xlu0 %v1184
    %v1420 = vpop.xlane.xlu0 %1419
    %1421 = vadd.xlane.f32.xlu0 %v1185
    %v1422 = vpop.xlane.xlu0 %1421
    %1423 = vadd.xlane.f32.xlu0 %v1186
    %v1424 = vpop.xlane.xlu0 %1423
    %1425 = vadd.xlane.f32.xlu0 %v1187
    %v1426 = vpop.xlane.xlu0 %1425
    %1427 = vadd.xlane.f32.xlu0 %v1188
    %v1428 = vpop.xlane.xlu0 %1427
    %1429 = vadd.xlane.f32.xlu0 %v1189
    %v1430 = vpop.xlane.xlu0 %1429
    %1431 = vadd.xlane.f32.xlu0 %v1190
    %v1432 = vpop.xlane.xlu0 %1431
    %1433 = vadd.xlane.f32.xlu0 %v1191
    %v1434 = vpop.xlane.xlu0 %1433
    %1435 = vadd.xlane.f32.xlu0 %v1192
    %v1436 = vpop.xlane.xlu0 %1435
    %1437 = vadd.xlane.f32.xlu0 %v1193
    %v1438 = vpop.xlane.xlu0 %1437
    %1439 = vadd.xlane.f32.xlu0 %v1194
    %v1440 = vpop.xlane.xlu0 %1439
    %1441 = vadd.xlane.f32.xlu0 %v1195
    %v1442 = vpop.xlane.xlu0 %1441
    %1443 = vadd.xlane.f32.xlu0 %v1196
    %v1444 = vpop.xlane.xlu0 %1443
    %1445 = vadd.xlane.f32.xlu0 %v1197
    %v1446 = vpop.xlane.xlu0 %1445
    %1447 = vadd.xlane.f32.xlu0 %v1198
    %v1448 = vpop.xlane.xlu0 %1447
    %1449 = vadd.xlane.f32.xlu0 %v1199
    %v1450 = vpop.xlane.xlu0 %1449
    %1451 = vadd.xlane.f32.xlu0 %v1200
    %v1452 = vpop.xlane.xlu0 %1451
    %1453 = vadd.xlane.f32.xlu0 %v1201
    %v1454 = vpop.xlane.xlu0 %1453
    %1455 = vadd.xlane.f32.xlu0 %v1202
    %v1456 = vpop.xlane.xlu0 %1455
    %1457 = vadd.xlane.f32.xlu0 %v1203
    %v1458 = vpop.xlane.xlu0 %1457
    %1459 = vadd.xlane.f32.xlu0 %v1204
    %v1460 = vpop.xlane.xlu0 %1459
    %v1461 = vstv %s28
    %v1462 = vadd.f32 %v1206, %v1461
    %v1463 = vadd.f32 %v1208, %v1461
    %v1464 = vadd.f32 %v1210, %v1461
    %v1465 = vadd.f32 %v1212, %v1461
    %v1466 = vadd.f32 %v1214, %v1461
    %v1467 = vadd.f32 %v1216, %v1461
    %v1468 = vadd.f32 %v1218, %v1461
    %v1469 = vadd.f32 %v1220, %v1461
    %v1470 = vadd.f32 %v1222, %v1461
    %v1471 = vadd.f32 %v1224, %v1461
    %v1472 = vadd.f32 %v1226, %v1461
    %v1473 = vadd.f32 %v1228, %v1461
    %v1474 = vadd.f32 %v1230, %v1461
    %v1475 = vadd.f32 %v1232, %v1461
    %v1476 = vadd.f32 %v1234, %v1461
    %v1477 = vadd.f32 %v1236, %v1461
    %v1478 = vadd.f32 %v1238, %v1461
    %v1479 = vadd.f32 %v1240, %v1461
    %v1480 = vadd.f32 %v1242, %v1461
    %v1481 = vadd.f32 %v1244, %v1461
    %v1482 = vadd.f32 %v1246, %v1461
    %v1483 = vadd.f32 %v1248, %v1461
    %v1484 = vadd.f32 %v1250, %v1461
    %v1485 = vadd.f32 %v1252, %v1461
    %v1486 = vadd.f32 %v1254, %v1461
    %v1487 = vadd.f32 %v1256, %v1461
    %v1488 = vadd.f32 %v1258, %v1461
    %v1489 = vadd.f32 %v1260, %v1461
    %v1490 = vadd.f32 %v1262, %v1461
    %v1491 = vadd.f32 %v1264, %v1461
    %v1492 = vadd.f32 %v1266, %v1461
    %v1493 = vadd.f32 %v1268, %v1461
    %v1494 = vadd.f32 %v1270, %v1461
    %v1495 = vadd.f32 %v1272, %v1461
    %v1496 = vadd.f32 %v1274, %v1461
    %v1497 = vadd.f32 %v1276, %v1461
    %v1498 = vadd.f32 %v1278, %v1461
    %v1499 = vadd.f32 %v1280, %v1461
    %v1500 = vadd.f32 %v1282, %v1461
    %v1501 = vadd.f32 %v1284, %v1461
    %v1502 = vadd.f32 %v1286, %v1461
    %v1503 = vadd.f32 %v1288, %v1461
    %v1504 = vadd.f32 %v1290, %v1461
    %v1505 = vadd.f32 %v1292, %v1461
    %v1506 = vadd.f32 %v1294, %v1461
    %v1507 = vadd.f32 %v1296, %v1461
    %v1508 = vadd.f32 %v1298, %v1461
    %v1509 = vadd.f32 %v1300, %v1461
    %v1510 = vadd.f32 %v1302, %v1461
    %v1511 = vadd.f32 %v1304, %v1461
    %v1512 = vadd.f32 %v1306, %v1461
    %v1513 = vadd.f32 %v1308, %v1461
    %v1514 = vadd.f32 %v1310, %v1461
    %v1515 = vadd.f32 %v1312, %v1461
    %v1516 = vadd.f32 %v1314, %v1461
    %v1517 = vadd.f32 %v1316, %v1461
    %v1518 = vadd.f32 %v1318, %v1461
    %v1519 = vadd.f32 %v1320, %v1461
    %v1520 = vadd.f32 %v1322, %v1461
    %v1521 = vadd.f32 %v1324, %v1461
    %v1522 = vadd.f32 %v1326, %v1461
    %v1523 = vadd.f32 %v1328, %v1461
    %v1524 = vadd.f32 %v1330, %v1461
    %v1525 = vadd.f32 %v1332, %v1461
    %v1526 = vadd.f32 %v1334, %v1461
    %v1527 = vadd.f32 %v1336, %v1461
    %v1528 = vadd.f32 %v1338, %v1461
    %v1529 = vadd.f32 %v1340, %v1461
    %v1530 = vadd.f32 %v1342, %v1461
    %v1531 = vadd.f32 %v1344, %v1461
    %v1532 = vadd.f32 %v1346, %v1461
    %v1533 = vadd.f32 %v1348, %v1461
    %v1534 = vadd.f32 %v1350, %v1461
    %v1535 = vadd.f32 %v1352, %v1461
    %v1536 = vadd.f32 %v1354, %v1461
    %v1537 = vadd.f32 %v1356, %v1461
    %v1538 = vadd.f32 %v1358, %v1461
    %v1539 = vadd.f32 %v1360, %v1461
    %v1540 = vadd.f32 %v1362, %v1461
    %v1541 = vadd.f32 %v1364, %v1461
    %v1542 = vadd.f32 %v1366, %v1461
    %v1543 = vadd.f32 %v1368, %v1461
    %v1544 = vadd.f32 %v1370, %v1461
    %v1545 = vadd.f32 %v1372, %v1461
    %v1546 = vadd.f32 %v1374, %v1461
    %v1547 = vadd.f32 %v1376, %v1461
    %v1548 = vadd.f32 %v1378, %v1461
    %v1549 = vadd.f32 %v1380, %v1461
    %v1550 = vadd.f32 %v1382, %v1461
    %v1551 = vadd.f32 %v1384, %v1461
    %v1552 = vadd.f32 %v1386, %v1461
    %v1553 = vadd.f32 %v1388, %v1461
    %v1554 = vadd.f32 %v1390, %v1461
    %v1555 = vadd.f32 %v1392, %v1461
    %v1556 = vadd.f32 %v1394, %v1461
    %v1557 = vadd.f32 %v1396, %v1461
    %v1558 = vadd.f32 %v1398, %v1461
    %v1559 = vadd.f32 %v1400, %v1461
    %v1560 = vadd.f32 %v1402, %v1461
    %v1561 = vadd.f32 %v1404, %v1461
    %v1562 = vadd.f32 %v1406, %v1461
    %v1563 = vadd.f32 %v1408, %v1461
    %v1564 = vadd.f32 %v1410, %v1461
    %v1565 = vadd.f32 %v1412, %v1461
    %v1566 = vadd.f32 %v1414, %v1461
    %v1567 = vadd.f32 %v1416, %v1461
    %v1568 = vadd.f32 %v1418, %v1461
    %v1569 = vadd.f32 %v1420, %v1461
    %v1570 = vadd.f32 %v1422, %v1461
    %v1571 = vadd.f32 %v1424, %v1461
    %v1572 = vadd.f32 %v1426, %v1461
    %v1573 = vadd.f32 %v1428, %v1461
    %v1574 = vadd.f32 %v1430, %v1461
    %v1575 = vadd.f32 %v1432, %v1461
    %v1576 = vadd.f32 %v1434, %v1461
    %v1577 = vadd.f32 %v1436, %v1461
    %v1578 = vadd.f32 %v1438, %v1461
    %v1579 = vadd.f32 %v1440, %v1461
    %v1580 = vadd.f32 %v1442, %v1461
    %v1581 = vadd.f32 %v1444, %v1461
    %v1582 = vadd.f32 %v1446, %v1461
    %v1583 = vadd.f32 %v1448, %v1461
    %v1584 = vadd.f32 %v1450, %v1461
    %v1585 = vadd.f32 %v1452, %v1461
    %v1586 = vadd.f32 %v1454, %v1461
    %v1587 = vadd.f32 %v1456, %v1461
    %v1588 = vadd.f32 %v1458, %v1461
    %v1589 = vadd.f32 %v1460, %v1461
    %v1718 = vlaneseq
    %v1719 = vand.u32 %v1718, 127
    %v1720 = vperm.slane %v1462, %v1719
    %v1721 = vadd.s32 %v1719, 4294967288
    %v1722 = vperm.slane %v1463, %v1721
    %vm1723 = vcmask 130112
    %v1724 = vsel %vm1723, %v1722, %v1720
    %v1725 = vadd.s32 %v1719, 4294967280
    %v1726 = vperm.slane %v1464, %v1725
    %vm1727 = vcmask 195712
    %v1728 = vsel %vm1727, %v1726, %v1724
    %v1729 = vadd.s32 %v1719, 4294967272
    %v1730 = vperm.slane %v1465, %v1729
    %vm1731 = vcmask 261312
    %v1732 = vsel %vm1731, %v1730, %v1728
    %v1733 = vadd.s32 %v1719, 4294967264
    %v1734 = vperm.slane %v1466, %v1733
    %vm1735 = vcmask 326912
    %v1736 = vsel %vm1735, %v1734, %v1732
    %v1737 = vadd.s32 %v1719, 4294967256
    %v1738 = vperm.slane %v1467, %v1737
    %vm1739 = vcmask 392512
    %v1740 = vsel %vm1739, %v1738, %v1736
    %v1741 = vadd.s32 %v1719, 4294967248
    %v1742 = vperm.slane %v1468, %v1741
    %vm1743 = vcmask 458112
    %v1744 = vsel %vm1743, %v1742, %v1740
    %v1745 = vadd.s32 %v1719, 4294967240
    %v1746 = vperm.slane %v1469, %v1745
    %vm1747 = vcmask 523712
    %v1748 = vsel %vm1747, %v1746, %v1744
    %v1749 = vadd.s32 %v1719, 4294967232
    %v1750 = vperm.slane %v1470, %v1749
    %vm1751 = vcmask 589312
    %v1752 = vsel %vm1751, %v1750, %v1748
    %v1753 = vadd.s32 %v1719, 4294967224
    %v1754 = vperm.slane %v1471, %v1753
    %vm1755 = vcmask 654912
    %v1756 = vsel %vm1755, %v1754, %v1752
    %v1757 = vadd.s32 %v1719, 4294967216
    %v1758 = vperm.slane %v1472, %v1757
    %vm1759 = vcmask 720512
    %v1760 = vsel %vm1759, %v1758, %v1756
    %v1761 = vadd.s32 %v1719, 4294967208
    %v1762 = vperm.slane %v1473, %v1761
    %vm1763 = vcmask 786112
    %v1764 = vsel %vm1763, %v1762, %v1760
    %v1765 = vadd.s32 %v1719, 4294967200
    %v1766 = vperm.slane %v1474, %v1765
    %vm1767 = vcmask 851712
    %v1768 = vsel %vm1767, %v1766, %v1764
    %v1769 = vadd.s32 %v1719, 4294967192
    %v1770 = vperm.slane %v1475, %v1769
    %vm1771 = vcmask 917312
    %v1772 = vsel %vm1771, %v1770, %v1768
    %v1773 = vadd.s32 %v1719, 4294967184
    %v1774 = vperm.slane %v1476, %v1773
    %vm1775 = vcmask 982912
    %v1776 = vsel %vm1775, %v1774, %v1772
    %v1777 = vadd.s32 %v1719, 4294967176
    %v1778 = vperm.slane %v1477, %v1777
    %vm1779 = vcmask 1048512
    %v1780 = vsel %vm1779, %v1778, %v1776
    %v1781 = vperm.slane %v1478, %v1719
    %v1782 = vperm.slane %v1479, %v1721
    %v1783 = vsel %vm1723, %v1782, %v1781
    %v1784 = vperm.slane %v1480, %v1725
    %v1785 = vsel %vm1727, %v1784, %v1783
    %v1786 = vperm.slane %v1481, %v1729
    %v1787 = vsel %vm1731, %v1786, %v1785
    %v1788 = vperm.slane %v1482, %v1733
    %v1789 = vsel %vm1735, %v1788, %v1787
    %v1790 = vperm.slane %v1483, %v1737
    %v1791 = vsel %vm1739, %v1790, %v1789
    %v1792 = vperm.slane %v1484, %v1741
    %v1793 = vsel %vm1743, %v1792, %v1791
    %v1794 = vperm.slane %v1485, %v1745
    %v1795 = vsel %vm1747, %v1794, %v1793
    %v1796 = vperm.slane %v1486, %v1749
    %v1797 = vsel %vm1751, %v1796, %v1795
    %v1798 = vperm.slane %v1487, %v1753
    %v1799 = vsel %vm1755, %v1798, %v1797
    %v1800 = vperm.slane %v1488, %v1757
    %v1801 = vsel %vm1759, %v1800, %v1799
    %v1802 = vperm.slane %v1489, %v1761
    %v1803 = vsel %vm1763, %v1802, %v1801
    %v1804 = vperm.slane %v1490, %v1765
    %v1805 = vsel %vm1767, %v1804, %v1803
    %v1806 = vperm.slane %v1491, %v1769
    %v1807 = vsel %vm1771, %v1806, %v1805
    %v1808 = vperm.slane %v1492, %v1773
    %v1809 = vsel %vm1775, %v1808, %v1807
    %v1810 = vperm.slane %v1493, %v1777
    %v1811 = vsel %vm1779, %v1810, %v1809
    %v1812 = vperm.slane %v1494, %v1719
    %v1813 = vperm.slane %v1495, %v1721
    %v1814 = vsel %vm1723, %v1813, %v1812
    %v1815 = vperm.slane %v1496, %v1725
    %v1816 = vsel %vm1727, %v1815, %v1814
    %v1817 = vperm.slane %v1497, %v1729
    %v1818 = vsel %vm1731, %v1817, %v1816
    %v1819 = vperm.slane %v1498, %v1733
    %v1820 = vsel %vm1735, %v1819, %v1818
    %v1821 = vperm.slane %v1499, %v1737
    %v1822 = vsel %vm1739, %v1821, %v1820
    %v1823 = vperm.slane %v1500, %v1741
    %v1824 = vsel %vm1743, %v1823, %v1822
    %v1825 = vperm.slane %v1501, %v1745
    %v1826 = vsel %vm1747, %v1825, %v1824
    %v1827 = vperm.slane %v1502, %v1749
    %v1828 = vsel %vm1751, %v1827, %v1826
    %v1829 = vperm.slane %v1503, %v1753
    %v1830 = vsel %vm1755, %v1829, %v1828
    %v1831 = vperm.slane %v1504, %v1757
    %v1832 = vsel %vm1759, %v1831, %v1830
    %v1833 = vperm.slane %v1505, %v1761
    %v1834 = vsel %vm1763, %v1833, %v1832
    %v1835 = vperm.slane %v1506, %v1765
    %v1836 = vsel %vm1767, %v1835, %v1834
    %v1837 = vperm.slane %v1507, %v1769
    %v1838 = vsel %vm1771, %v1837, %v1836
    %v1839 = vperm.slane %v1508, %v1773
    %v1840 = vsel %vm1775, %v1839, %v1838
    %v1841 = vperm.slane %v1509, %v1777
    %v1842 = vsel %vm1779, %v1841, %v1840
    %v1843 = vperm.slane %v1510, %v1719
    %v1844 = vperm.slane %v1511, %v1721
    %v1845 = vsel %vm1723, %v1844, %v1843
    %v1846 = vperm.slane %v1512, %v1725
    %v1847 = vsel %vm1727, %v1846, %v1845
    %v1848 = vperm.slane %v1513, %v1729
    %v1849 = vsel %vm1731, %v1848, %v1847
    %v1850 = vperm.slane %v1514, %v1733
    %v1851 = vsel %vm1735, %v1850, %v1849
    %v1852 = vperm.slane %v1515, %v1737
    %v1853 = vsel %vm1739, %v1852, %v1851
    %v1854 = vperm.slane %v1516, %v1741
    %v1855 = vsel %vm1743, %v1854, %v1853
    %v1856 = vperm.slane %v1517, %v1745
    %v1857 = vsel %vm1747, %v1856, %v1855
    %v1858 = vperm.slane %v1518, %v1749
    %v1859 = vsel %vm1751, %v1858, %v1857
    %v1860 = vperm.slane %v1519, %v1753
    %v1861 = vsel %vm1755, %v1860, %v1859
    %v1862 = vperm.slane %v1520, %v1757
    %v1863 = vsel %vm1759, %v1862, %v1861
    %v1864 = vperm.slane %v1521, %v1761
    %v1865 = vsel %vm1763, %v1864, %v1863
    %v1866 = vperm.slane %v1522, %v1765
    %v1867 = vsel %vm1767, %v1866, %v1865
    %v1868 = vperm.slane %v1523, %v1769
    %v1869 = vsel %vm1771, %v1868, %v1867
    %v1870 = vperm.slane %v1524, %v1773
    %v1871 = vsel %vm1775, %v1870, %v1869
    %v1872 = vperm.slane %v1525, %v1777
    %v1873 = vsel %vm1779, %v1872, %v1871
    %v1874 = vperm.slane %v1526, %v1719
    %v1875 = vperm.slane %v1527, %v1721
    %v1876 = vsel %vm1723, %v1875, %v1874
    %v1877 = vperm.slane %v1528, %v1725
    %v1878 = vsel %vm1727, %v1877, %v1876
    %v1879 = vperm.slane %v1529, %v1729
    %v1880 = vsel %vm1731, %v1879, %v1878
    %v1881 = vperm.slane %v1530, %v1733
    %v1882 = vsel %vm1735, %v1881, %v1880
    %v1883 = vperm.slane %v1531, %v1737
    %v1884 = vsel %vm1739, %v1883, %v1882
    %v1885 = vperm.slane %v1532, %v1741
    %v1886 = vsel %vm1743, %v1885, %v1884
    %v1887 = vperm.slane %v1533, %v1745
    %v1888 = vsel %vm1747, %v1887, %v1886
    %v1889 = vperm.slane %v1534, %v1749
    %v1890 = vsel %vm1751, %v1889, %v1888
    %v1891 = vperm.slane %v1535, %v1753
    %v1892 = vsel %vm1755, %v1891, %v1890
    %v1893 = vperm.slane %v1536, %v1757
    %v1894 = vsel %vm1759, %v1893, %v1892
    %v1895 = vperm.slane %v1537, %v1761
    %v1896 = vsel %vm1763, %v1895, %v1894
    %v1897 = vperm.slane %v1538, %v1765
    %v1898 = vsel %vm1767, %v1897, %v1896
    %v1899 = vperm.slane %v1539, %v1769
    %v1900 = vsel %vm1771, %v1899, %v1898
    %v1901 = vperm.slane %v1540, %v1773
    %v1902 = vsel %vm1775, %v1901, %v1900
    %v1903 = vperm.slane %v1541, %v1777
    %v1904 = vsel %vm1779, %v1903, %v1902
    %v1905 = vperm.slane %v1542, %v1719
    %v1906 = vperm.slane %v1543, %v1721
    %v1907 = vsel %vm1723, %v1906, %v1905
    %v1908 = vperm.slane %v1544, %v1725
    %v1909 = vsel %vm1727, %v1908, %v1907
    %v1910 = vperm.slane %v1545, %v1729
    %v1911 = vsel %vm1731, %v1910, %v1909
    %v1912 = vperm.slane %v1546, %v1733
    %v1913 = vsel %vm1735, %v1912, %v1911
    %v1914 = vperm.slane %v1547, %v1737
    %v1915 = vsel %vm1739, %v1914, %v1913
    %v1916 = vperm.slane %v1548, %v1741
    %v1917 = vsel %vm1743, %v1916, %v1915
    %v1918 = vperm.slane %v1549, %v1745
    %v1919 = vsel %vm1747, %v1918, %v1917
    %v1920 = vperm.slane %v1550, %v1749
    %v1921 = vsel %vm1751, %v1920, %v1919
    %v1922 = vperm.slane %v1551, %v1753
    %v1923 = vsel %vm1755, %v1922, %v1921
    %v1924 = vperm.slane %v1552, %v1757
    %v1925 = vsel %vm1759, %v1924, %v1923
    %v1926 = vperm.slane %v1553, %v1761
    %v1927 = vsel %vm1763, %v1926, %v1925
    %v1928 = vperm.slane %v1554, %v1765
    %v1929 = vsel %vm1767, %v1928, %v1927
    %v1930 = vperm.slane %v1555, %v1769
    %v1931 = vsel %vm1771, %v1930, %v1929
    %v1932 = vperm.slane %v1556, %v1773
    %v1933 = vsel %vm1775, %v1932, %v1931
    %v1934 = vperm.slane %v1557, %v1777
    %v1935 = vsel %vm1779, %v1934, %v1933
    %v1936 = vperm.slane %v1558, %v1719
    %v1937 = vperm.slane %v1559, %v1721
    %v1938 = vsel %vm1723, %v1937, %v1936
    %v1939 = vperm.slane %v1560, %v1725
    %v1940 = vsel %vm1727, %v1939, %v1938
    %v1941 = vperm.slane %v1561, %v1729
    %v1942 = vsel %vm1731, %v1941, %v1940
    %v1943 = vperm.slane %v1562, %v1733
    %v1944 = vsel %vm1735, %v1943, %v1942
    %v1945 = vperm.slane %v1563, %v1737
    %v1946 = vsel %vm1739, %v1945, %v1944
    %v1947 = vperm.slane %v1564, %v1741
    %v1948 = vsel %vm1743, %v1947, %v1946
    %v1949 = vperm.slane %v1565, %v1745
    %v1950 = vsel %vm1747, %v1949, %v1948
    %v1951 = vperm.slane %v1566, %v1749
    %v1952 = vsel %vm1751, %v1951, %v1950
    %v1953 = vperm.slane %v1567, %v1753
    %v1954 = vsel %vm1755, %v1953, %v1952
    %v1955 = vperm.slane %v1568, %v1757
    %v1956 = vsel %vm1759, %v1955, %v1954
    %v1957 = vperm.slane %v1569, %v1761
    %v1958 = vsel %vm1763, %v1957, %v1956
    %v1959 = vperm.slane %v1570, %v1765
    %v1960 = vsel %vm1767, %v1959, %v1958
    %v1961 = vperm.slane %v1571, %v1769
    %v1962 = vsel %vm1771, %v1961, %v1960
    %v1963 = vperm.slane %v1572, %v1773
    %v1964 = vsel %vm1775, %v1963, %v1962
    %v1965 = vperm.slane %v1573, %v1777
    %v1966 = vsel %vm1779, %v1965, %v1964
    %v1967 = vperm.slane %v1574, %v1719
    %v1968 = vperm.slane %v1575, %v1721
    %v1969 = vsel %vm1723, %v1968, %v1967
    %v1970 = vperm.slane %v1576, %v1725
    %v1971 = vsel %vm1727, %v1970, %v1969
    %v1972 = vperm.slane %v1577, %v1729
    %v1973 = vsel %vm1731, %v1972, %v1971
    %v1974 = vperm.slane %v1578, %v1733
    %v1975 = vsel %vm1735, %v1974, %v1973
    %v1976 = vperm.slane %v1579, %v1737
    %v1977 = vsel %vm1739, %v1976, %v1975
    %v1978 = vperm.slane %v1580, %v1741
    %v1979 = vsel %vm1743, %v1978, %v1977
    %v1980 = vperm.slane %v1581, %v1745
    %v1981 = vsel %vm1747, %v1980, %v1979
    %v1982 = vperm.slane %v1582, %v1749
    %v1983 = vsel %vm1751, %v1982, %v1981
    %v1984 = vperm.slane %v1583, %v1753
    %v1985 = vsel %vm1755, %v1984, %v1983
    %v1986 = vperm.slane %v1584, %v1757
    %v1987 = vsel %vm1759, %v1986, %v1985
    %v1988 = vperm.slane %v1585, %v1761
    %v1989 = vsel %vm1763, %v1988, %v1987
    %v1990 = vperm.slane %v1586, %v1765
    %v1991 = vsel %vm1767, %v1990, %v1989
    %v1992 = vperm.slane %v1587, %v1769
    %v1993 = vsel %vm1771, %v1992, %v1991
    %v1994 = vperm.slane %v1588, %v1773
    %v1995 = vsel %vm1775, %v1994, %v1993
    %v1996 = vperm.slane %v1589, %v1777
    %v1997 = vsel %vm1779, %v1996, %v1995
    %vm1998 = vcmask 1041409
    %v1999 = vsel %vm1998, %v1811, %v1780
    %vm2000 = vcmask 1042434
    %v2001 = vsel %vm2000, %v1842, %v1999
    %vm2002 = vcmask 1043459
    %v2003 = vsel %vm2002, %v1873, %v2001
    %vm2004 = vcmask 1044484
    %v2005 = vsel %vm2004, %v1904, %v2003
    %vm2006 = vcmask 1045509
    %v2007 = vsel %vm2006, %v1935, %v2005
    %vm2008 = vcmask 1046534
    %v2009 = vsel %vm2008, %v1966, %v2007
    %vm2010 = vcmask 1047559
    %v2011 = vsel %vm2010, %v1997, %v2009
    %2013 = vst [vmem:[#allocation3] sm:$0xff] %v2011
    // Predicated region
    $region22: #{tpu_custom_call.1} parent=1 // pred_check
      _
    $region23: #{tpu_custom_call.1} parent=1 // pred_check_branch
      %2015 = sbr.rel (0) target = $region25
    $region24: #{tpu_custom_call.1} parent=1 // pred_region
      %2017 = vsyncadd [#allocation4], 0
      %s2019 = sshll.u32 [#allocation3], 4
      %s2020 = int_to_ptr.vmem [resolvable:$true] %s2019
      %s2021 = sshll.u32 %s5, 4
      %s2022 = int_to_ptr.hbm [resolvable:$true] %s2021
      %2024 = dma.vmem_to_hbm [thread:$0]  %s2020, 128, %s2022, [#allocation4]
    $region25: #{tpu_custom_call.1} parent=1 // pred_fallthru
      _
    // Predicated region
    $region26: #{tpu_custom_call.1} parent=1 // pred_check
      _
    $region27: #{tpu_custom_call.1} parent=1 // pred_check_branch
      %2026 = sbr.rel (0) target = $region29
    $region28: #{tpu_custom_call.1} parent=1 // pred_region
      %2028 = dma.done [#allocation4], 128
    $region29: #{tpu_custom_call.1} parent=1 // pred_fallthru
      _
    %2029 = vsyncpa [#allocation4], 1

</llo_original>
